<compile_context>
chip_gen: v5e
topology: v5e:2x2
jax: 0.10.0
libtpu: 0.0.40
codegen_flags: <defaults>
</compile_context>

<pallas_src>
import functools

import numpy as np
import jax
import jax.numpy as jnp
from jax import lax
from jax.experimental import pallas as pl
from jax.experimental.pallas import tpu as pltpu


# Tap order: t = (dh+1)*3 + (dw+1) == kh*3 + kw, matching the (kh, kw) axes of
# the PyTorch OIHW weight after the host-side transpose below.
_TAPS = tuple((dh, dw) for dh in (-1, 0, 1) for dw in (-1, 0, 1))


def _combine_conv_kernel(x_ref, mask_ref, w_ref, b_ref, o_ref, stack_ref, *,
                         nc, C, W, LANES):
    """Fused CombineConv forward for one block of lane-concatenated images.

    x_ref     : (C, LANES)        VMEM  activations, Nb images along lanes
    mask_ref  : (9, LANES)        VMEM  per-tap boundary masks (1 inside, 0 pad)
    w_ref     : (nc, C, 9*C)      VMEM  matmul weights  [layer, cout, tap*cin]
    b_ref     : (nc, C, 1)        VMEM  biases
    o_ref     : (C, LANES)        VMEM  output
    stack_ref : (9*C, LANES) f32  VMEM  scratch holding the shifted tap stack
    """
    x0 = x_ref[...].astype(jnp.float32)                      # (C, LANES)
    masks = mask_ref[...]                                     # (9, LANES)
    mask_rows = [masks[t:t + 1, :] for t in range(9)]         # hoisted slices

    def layer(l, x_cur):
        # 9 lane-rolls (XLU) + boundary masks (VPU) -> (9*C, LANES) tap stack.
        for t, (dh, dw) in enumerate(_TAPS):
            shift = (-(dh * W + dw)) % LANES
            shifted = x_cur if shift == 0 else pltpu.roll(x_cur, shift, axis=1)
            if dh == 0 and dw == 0:
                stack_ref[t * C:(t + 1) * C, :] = shifted       # center tap
            else:
                stack_ref[t * C:(t + 1) * C, :] = shifted * mask_rows[t]
        # Channel mix: one MXU matmul per layer, bias folded in afterwards.
        # NOTE: casting the two operands to bf16 here roughly doubles MXU
        # throughput on v6e/v7x if the reduced precision is acceptable.
        y = jnp.dot(w_ref[l], stack_ref[...],
                    preferred_element_type=jnp.float32) + b_ref[l]
        # ELU(alpha=1); exp argument clamped at 0 so the positive branch can't
        # overflow.  TODO(synk): switch to jnp.expm1 once it is in the Mosaic
        # lowering set (exp(x)-1 is within ~1e-7 of torch ELU in f32 here).
        elu = jnp.where(y > 0, y, jnp.exp(jnp.minimum(y, 0.0)) - 1.0)
        return x_cur + elu

    if nc <= 8:
        # Small layer counts: fully unroll for LLO scheduling visibility.
        x_cur = x0
        for l in range(nc):
            x_cur = layer(l, x_cur)
    else:
        # Large layer counts: bound live ranges with a fori_loop; weights are
        # sliced dynamically from the resident (nc, C, 9*C) VMEM tensor.
        x_cur = lax.fori_loop(0, nc, layer, x0)

    o_ref[...] = x_cur.astype(o_ref.dtype)


def _build_tap_masks(H, W):
    """mask[t, h*W+w] = 1.0 iff neighbor (h+dh, w+dw) lies inside the image."""
    masks = np.zeros((9, H * W), np.float32)
    for t, (dh, dw) in enumerate(_TAPS):
        m = np.zeros((H, W), np.float32)
        h0, h1 = max(0, -dh), min(H, H - dh)
        w0, w1 = max(0, -dw), min(W, W - dw)
        m[h0:h1, w0:w1] = 1.0
        masks[t] = m.reshape(-1)
    return masks


def _pick_batch_block(N, HW, max_lanes=2048):
    """Images per grid step: widest divisor of N within the lane budget,
    preferring to keep >=2 grid steps (v7x megacore) when the batch allows."""
    best = 1
    for nb in range(1, N + 1):
        if N % nb == 0 and nb * HW <= max_lanes:
            best = nb
    if best > 1 and N // best < 2:
        for nb in range(best - 1, 0, -1):
            if N % nb == 0 and N // nb >= 2:
                return nb
    return best


def combine_conv_forward(x, weights, biases, *, max_lanes=2048):
    """CombineConv forward.

    x       : (N, C, H, W) f32                (NCHW, PyTorch convention)
    weights : list of nc arrays (C, C, 3, 3)  (OIHW, PyTorch convention)
    biases  : list of nc arrays (C,)
    """
    N, C, H, W = x.shape
    HW = H * W
    nc = len(weights)

    Nb = _pick_batch_block(N, HW, max_lanes)
    G = N // Nb
    LANES = Nb * HW

    # (N, C, H, W) -> (G, C, Nb*HW): Nb images lane-concatenated per block.
    x_packed = jnp.transpose(x.reshape(G, Nb, C, HW), (0, 2, 1, 3)).reshape(G, C, LANES)

    # OIHW -> (layer, cout, kh, kw, cin) -> (nc, C, 9*C) so the tap stack
    # (rows ordered [tap, cin]) is consumed by a single matmul per layer.
    w_mat = jnp.transpose(jnp.stack(weights), (0, 1, 3, 4, 2)).reshape(nc, C, 9 * C)
    b_mat = jnp.stack(biases).reshape(nc, C, 1)

    # Per-image boundary masks, tiled across the Nb lane-concatenated images
    # (this also zeroes the cross-image wrap of the global lane-roll).
    tap_masks = jnp.asarray(np.tile(_build_tap_masks(H, W), (1, Nb)))  # (9, LANES)

    kernel = functools.partial(_combine_conv_kernel, nc=nc, C=C, W=W, LANES=LANES)

    # Explicit scoped-VMEM budget: double-buffered in/out blocks + resident
    # masks/weights/biases + the tap-stack scratch, with generous headroom,
    # capped so it stays safe on v7x's 64 MiB physical VMEM.
    block_bytes = C * LANES * 4
    vmem_needed = (4 * block_bytes                 # in + out, double-buffered
                   + 9 * LANES * 4                 # masks
                   + nc * C * (9 * C + 1) * 4      # weights + biases
                   + 9 * C * LANES * 4)            # tap-stack scratch
    vmem_limit = int(min(max(4 * vmem_needed, 16 << 20), 48 << 20))

    out = pl.pallas_call(
        kernel,
        out_shape=jax.ShapeDtypeStruct((G, C, LANES), x.dtype),
        grid_spec=pltpu.PrefetchScalarGridSpec(
            num_scalar_prefetch=0,
            grid=(G,),
            in_specs=[
                pl.BlockSpec((None, C, LANES), lambda g: (g, 0, 0)),   # acts
                pl.BlockSpec((9, LANES), lambda g: (0, 0)),            # masks
                pl.BlockSpec((nc, C, 9 * C), lambda g: (0, 0, 0)),     # weights
                pl.BlockSpec((nc, C, 1), lambda g: (0, 0, 0)),         # biases
            ],
            out_specs=pl.BlockSpec((None, C, LANES), lambda g: (g, 0, 0)),
            scratch_shapes=[pltpu.VMEM((9 * C, LANES), jnp.float32)],
        ),
        compiler_params=pltpu.CompilerParams(
            dimension_semantics=("parallel",),
            vmem_limit_bytes=vmem_limit),
    )(x_packed, tap_masks, w_mat, b_mat)

    return jnp.transpose(out.reshape(G, C, Nb, HW), (0, 2, 1, 3)).reshape(N, C, H, W)


# ------------------------- pure-JAX reference -------------------------------
def _reference(x, weights, biases):
    """NCHW / OIHW reference matching the PyTorch module semantics."""
    for w, b in zip(weights, biases):
        y = lax.conv_general_dilated(
            x, w, window_strides=(1, 1), padding="SAME",
            dimension_numbers=("NCHW", "OIHW", "NCHW"))
        y = y + b[None, :, None, None]
        x = x + jnp.where(y > 0, y, jnp.expm1(y))
    return x


def _init_params(key, chan, nc, kern=3):
    """Deterministic synthetic init (shapes match nn.Conv2d(chan, chan, kern))."""
    weights, biases = [], []
    fan_in = chan * kern * kern
    bound = 1.0 / float(np.sqrt(fan_in))
    for i in range(nc):
        kw, kb = jax.random.split(jax.random.fold_in(key, i))
        weights.append(jax.random.uniform(                    # OIHW (PyTorch)
            kw, (chan, chan, kern, kern), jnp.float32, -bound, bound))
        biases.append(jax.random.uniform(
            kb, (chan,), jnp.float32, -bound, bound))
    return weights, biases


if __name__ == "__main__":
    key = jax.random.PRNGKey(0)
    N, C, H, W = 4, 4, 16, 16   # batch=4 exercises the lane-batched (Nb=2) path
    nc = 2                      # number of residual conv layers

    kx, kp = jax.random.split(key)
    x = jax.random.normal(kx, (N, C, H, W), jnp.float32)      # NCHW like PyTorch
    weights, biases = _init_params(kp, C, nc)

    out = combine_conv_forward(x, weights, biases)
    out = jax.block_until_ready(out)

    ref = _reference(x, weights, biases)
    assert out.shape == (N, C, H, W)
    assert jnp.allclose(out, ref, atol=1e-4, rtol=1e-4), "mismatch vs reference"

    print("KERNEL_OK")
</pallas_src>

<mosaic_0001>
module attributes {stable_mosaic.version = 11 : i64} {
  func.func @_combine_conv_kernel(%arg0: i32, %arg1: memref<1x4x512xf32, #tpu.memory_space<vmem>>, %arg2: memref<9x512xf32, #tpu.memory_space<vmem>>, %arg3: memref<2x4x36xf32, #tpu.memory_space<vmem>>, %arg4: memref<2x4x1xf32, #tpu.memory_space<vmem>>, %arg5: memref<1x4x512xf32, #tpu.memory_space<vmem>>, %arg6: memref<36x512xf32, #tpu.memory_space<vmem>>) attributes {dimension_semantics = [#tpu.dimension_semantics<parallel>], iteration_bounds = array<i64: 2>, scalar_prefetch = 0 : i64, scratch_operands = 1 : i64, tpu.core_type = #tpu.core_type<tc>, window_params = [{transform_indices = @transform_0, window_bounds = array<i64: 1, 4, 512>}, {pipeline_mode = #tpu.pipeline_mode<synchronous>, transform_indices = @transform_1, window_bounds = array<i64: 9, 512>}, {pipeline_mode = #tpu.pipeline_mode<synchronous>, transform_indices = @transform_2, window_bounds = array<i64: 2, 4, 36>}, {pipeline_mode = #tpu.pipeline_mode<synchronous>, transform_indices = @transform_3, window_bounds = array<i64: 2, 4, 1>}, {transform_indices = @transform_4, window_bounds = array<i64: 1, 4, 512>}]} {
    %c0 = arith.constant 0 : index
    %c0_0 = arith.constant 0 : index
    %c0_1 = arith.constant 0 : index
    %0 = vector.load %arg1[%c0, %c0_0, %c0_1] : memref<1x4x512xf32, #tpu.memory_space<vmem>>, vector<1x4x512xf32>
    %1 = vector.shape_cast %0 : vector<1x4x512xf32> to vector<4x512xf32>
    %c0_2 = arith.constant 0 : index
    %c0_3 = arith.constant 0 : index
    %2 = vector.load %arg2[%c0_2, %c0_3] : memref<9x512xf32, #tpu.memory_space<vmem>>, vector<9x512xf32>
    %3 = vector.extract_strided_slice %2 {offsets = [0, 0], sizes = [1, 512], strides = [1, 1]} : vector<9x512xf32> to vector<1x512xf32>
    %4 = vector.extract_strided_slice %2 {offsets = [1, 0], sizes = [1, 512], strides = [1, 1]} : vector<9x512xf32> to vector<1x512xf32>
    %5 = vector.extract_strided_slice %2 {offsets = [2, 0], sizes = [1, 512], strides = [1, 1]} : vector<9x512xf32> to vector<1x512xf32>
    %6 = vector.extract_strided_slice %2 {offsets = [3, 0], sizes = [1, 512], strides = [1, 1]} : vector<9x512xf32> to vector<1x512xf32>
    %7 = vector.extract_strided_slice %2 {offsets = [5, 0], sizes = [1, 512], strides = [1, 1]} : vector<9x512xf32> to vector<1x512xf32>
    %8 = vector.extract_strided_slice %2 {offsets = [6, 0], sizes = [1, 512], strides = [1, 1]} : vector<9x512xf32> to vector<1x512xf32>
    %9 = vector.extract_strided_slice %2 {offsets = [7, 0], sizes = [1, 512], strides = [1, 1]} : vector<9x512xf32> to vector<1x512xf32>
    %10 = vector.extract_strided_slice %2 {offsets = [8, 0], sizes = [1, 512], strides = [1, 1]} : vector<9x512xf32> to vector<1x512xf32>
    %c17_i32 = arith.constant 17 : i32
    %11 = tpu.dynamic_rotate %1 by %c17_i32 dim 1 : vector<4x512xf32>, i32 -> vector<4x512xf32>
    %12 = vector.broadcast %3 : vector<1x512xf32> to vector<4x512xf32>
    %13 = arith.mulf %11, %12 : vector<4x512xf32>
    %c0_4 = arith.constant 0 : index
    %c0_5 = arith.constant 0 : index
    %14 = vector.load %arg6[%c0_4, %c0_5] : memref<36x512xf32, #tpu.memory_space<vmem>>, vector<4x512xf32>
    tpu.vector_store %arg6[%c0_4, %c0_5], %13 {strides = array<i32>} : memref<36x512xf32, #tpu.memory_space<vmem>>, vector<4x512xf32>,
    %c16_i32 = arith.constant 16 : i32
    %15 = tpu.dynamic_rotate %1 by %c16_i32 dim 1 : vector<4x512xf32>, i32 -> vector<4x512xf32>
    %16 = vector.broadcast %4 : vector<1x512xf32> to vector<4x512xf32>
    %17 = arith.mulf %15, %16 : vector<4x512xf32>
    %c4 = arith.constant 4 : index
    %c0_6 = arith.constant 0 : index
    %18 = vector.load %arg6[%c4, %c0_6] : memref<36x512xf32, #tpu.memory_space<vmem>>, vector<4x512xf32>
    tpu.vector_store %arg6[%c4, %c0_6], %17 {strides = array<i32>} : memref<36x512xf32, #tpu.memory_space<vmem>>, vector<4x512xf32>,
    %c15_i32 = arith.constant 15 : i32
    %19 = tpu.dynamic_rotate %1 by %c15_i32 dim 1 : vector<4x512xf32>, i32 -> vector<4x512xf32>
    %20 = vector.broadcast %5 : vector<1x512xf32> to vector<4x512xf32>
    %21 = arith.mulf %19, %20 : vector<4x512xf32>
    %c8 = arith.constant 8 : index
    %c0_7 = arith.constant 0 : index
    %22 = vector.load %arg6[%c8, %c0_7] : memref<36x512xf32, #tpu.memory_space<vmem>>, vector<4x512xf32>
    tpu.vector_store %arg6[%c8, %c0_7], %21 {strides = array<i32>} : memref<36x512xf32, #tpu.memory_space<vmem>>, vector<4x512xf32>,
    %c1_i32 = arith.constant 1 : i32
    %23 = tpu.dynamic_rotate %1 by %c1_i32 dim 1 : vector<4x512xf32>, i32 -> vector<4x512xf32>
    %24 = vector.broadcast %6 : vector<1x512xf32> to vector<4x512xf32>
    %25 = arith.mulf %23, %24 : vector<4x512xf32>
    %c12 = arith.constant 12 : index
    %c0_8 = arith.constant 0 : index
    %26 = vector.load %arg6[%c12, %c0_8] : memref<36x512xf32, #tpu.memory_space<vmem>>, vector<4x512xf32>
    tpu.vector_store %arg6[%c12, %c0_8], %25 {strides = array<i32>} : memref<36x512xf32, #tpu.memory_space<vmem>>, vector<4x512xf32>,
    %c16 = arith.constant 16 : index
    %c0_9 = arith.constant 0 : index
    %27 = vector.load %arg6[%c16, %c0_9] : memref<36x512xf32, #tpu.memory_space<vmem>>, vector<4x512xf32>
    tpu.vector_store %arg6[%c16, %c0_9], %1 {strides = array<i32>} : memref<36x512xf32, #tpu.memory_space<vmem>>, vector<4x512xf32>,
    %c511_i32 = arith.constant 511 : i32
    %28 = tpu.dynamic_rotate %1 by %c511_i32 dim 1 : vector<4x512xf32>, i32 -> vector<4x512xf32>
    %29 = vector.broadcast %7 : vector<1x512xf32> to vector<4x512xf32>
    %30 = arith.mulf %28, %29 : vector<4x512xf32>
    %c20 = arith.constant 20 : index
    %c0_10 = arith.constant 0 : index
    %31 = vector.load %arg6[%c20, %c0_10] : memref<36x512xf32, #tpu.memory_space<vmem>>, vector<4x512xf32>
    tpu.vector_store %arg6[%c20, %c0_10], %30 {strides = array<i32>} : memref<36x512xf32, #tpu.memory_space<vmem>>, vector<4x512xf32>,
    %c497_i32 = arith.constant 497 : i32
    %32 = tpu.dynamic_rotate %1 by %c497_i32 dim 1 : vector<4x512xf32>, i32 -> vector<4x512xf32>
    %33 = vector.broadcast %8 : vector<1x512xf32> to vector<4x512xf32>
    %34 = arith.mulf %32, %33 : vector<4x512xf32>
    %c24 = arith.constant 24 : index
    %c0_11 = arith.constant 0 : index
    %35 = vector.load %arg6[%c24, %c0_11] : memref<36x512xf32, #tpu.memory_space<vmem>>, vector<4x512xf32>
    tpu.vector_store %arg6[%c24, %c0_11], %34 {strides = array<i32>} : memref<36x512xf32, #tpu.memory_space<vmem>>, vector<4x512xf32>,
    %c496_i32 = arith.constant 496 : i32
    %36 = tpu.dynamic_rotate %1 by %c496_i32 dim 1 : vector<4x512xf32>, i32 -> vector<4x512xf32>
    %37 = vector.broadcast %9 : vector<1x512xf32> to vector<4x512xf32>
    %38 = arith.mulf %36, %37 : vector<4x512xf32>
    %c28 = arith.constant 28 : index
    %c0_12 = arith.constant 0 : index
    %39 = vector.load %arg6[%c28, %c0_12] : memref<36x512xf32, #tpu.memory_space<vmem>>, vector<4x512xf32>
    tpu.vector_store %arg6[%c28, %c0_12], %38 {strides = array<i32>} : memref<36x512xf32, #tpu.memory_space<vmem>>, vector<4x512xf32>,
    %c495_i32 = arith.constant 495 : i32
    %40 = tpu.dynamic_rotate %1 by %c495_i32 dim 1 : vector<4x512xf32>, i32 -> vector<4x512xf32>
    %41 = vector.broadcast %10 : vector<1x512xf32> to vector<4x512xf32>
    %42 = arith.mulf %40, %41 : vector<4x512xf32>
    %c32 = arith.constant 32 : index
    %c0_13 = arith.constant 0 : index
    %43 = vector.load %arg6[%c32, %c0_13] : memref<36x512xf32, #tpu.memory_space<vmem>>, vector<4x512xf32>
    tpu.vector_store %arg6[%c32, %c0_13], %42 {strides = array<i32>} : memref<36x512xf32, #tpu.memory_space<vmem>>, vector<4x512xf32>,
    %c0_14 = arith.constant 0 : index
    %c0_15 = arith.constant 0 : index
    %c0_16 = arith.constant 0 : index
    %44 = vector.load %arg3[%c0_14, %c0_15, %c0_16] : memref<2x4x36xf32, #tpu.memory_space<vmem>>, vector<1x4x36xf32>
    %45 = vector.shape_cast %44 : vector<1x4x36xf32> to vector<4x36xf32>
    %c0_17 = arith.constant 0 : index
    %c0_18 = arith.constant 0 : index
    %46 = vector.load %arg6[%c0_17, %c0_18] : memref<36x512xf32, #tpu.memory_space<vmem>>, vector<36x512xf32>
    %cst = arith.constant dense<0.000000e+00> : vector<4x512xf32>
    %47 = tpu.matmul %45, %46, %cst {dimension_numbers = #tpu.dot_dimension_numbers<[1], [0], [0], [1], [0, 0, 1, 1], [], []>} : vector<4x36xf32>, vector<36x512xf32>, vector<4x512xf32> -> vector<4x512xf32>
    %c0_19 = arith.constant 0 : index
    %c0_20 = arith.constant 0 : index
    %c0_21 = arith.constant 0 : index
    %48 = vector.load %arg4[%c0_19, %c0_20, %c0_21] : memref<2x4x1xf32, #tpu.memory_space<vmem>>, vector<1x4x1xf32>
    %49 = vector.shape_cast %48 : vector<1x4x1xf32> to vector<4x1xf32>
    %50 = vector.broadcast %49 : vector<4x1xf32> to vector<4x512xf32>
    %51 = arith.addf %47, %50 : vector<4x512xf32>
    %cst_22 = arith.constant 0.000000e+00 : f32
    %52 = vector.broadcast %cst_22 : f32 to vector<4x512xf32>
    %53 = arith.cmpf ogt, %51, %52 : vector<4x512xf32>
    %cst_23 = arith.constant 0.000000e+00 : f32
    %54 = vector.broadcast %cst_23 : f32 to vector<4x512xf32>
    %55 = arith.minimumf %51, %54 : vector<4x512xf32>
    %56 = math.exp %55 : vector<4x512xf32>
    %cst_24 = arith.constant 1.000000e+00 : f32
    %57 = vector.broadcast %cst_24 : f32 to vector<4x512xf32>
    %58 = arith.subf %56, %57 : vector<4x512xf32>
    %59 = arith.select %53, %51, %58 : vector<4x512xi1>, vector<4x512xf32>
    %60 = arith.addf %1, %59 : vector<4x512xf32>
    %c17_i32_25 = arith.constant 17 : i32
    %61 = tpu.dynamic_rotate %60 by %c17_i32_25 dim 1 : vector<4x512xf32>, i32 -> vector<4x512xf32>
    %62 = vector.broadcast %3 : vector<1x512xf32> to vector<4x512xf32>
    %63 = arith.mulf %61, %62 : vector<4x512xf32>
    %c0_26 = arith.constant 0 : index
    %c0_27 = arith.constant 0 : index
    %64 = vector.load %arg6[%c0_26, %c0_27] : memref<36x512xf32, #tpu.memory_space<vmem>>, vector<4x512xf32>
    tpu.vector_store %arg6[%c0_26, %c0_27], %63 {strides = array<i32>} : memref<36x512xf32, #tpu.memory_space<vmem>>, vector<4x512xf32>,
    %c16_i32_28 = arith.constant 16 : i32
    %65 = tpu.dynamic_rotate %60 by %c16_i32_28 dim 1 : vector<4x512xf32>, i32 -> vector<4x512xf32>
    %66 = vector.broadcast %4 : vector<1x512xf32> to vector<4x512xf32>
    %67 = arith.mulf %65, %66 : vector<4x512xf32>
    %c4_29 = arith.constant 4 : index
    %c0_30 = arith.constant 0 : index
    %68 = vector.load %arg6[%c4_29, %c0_30] : memref<36x512xf32, #tpu.memory_space<vmem>>, vector<4x512xf32>
    tpu.vector_store %arg6[%c4_29, %c0_30], %67 {strides = array<i32>} : memref<36x512xf32, #tpu.memory_space<vmem>>, vector<4x512xf32>,
    %c15_i32_31 = arith.constant 15 : i32
    %69 = tpu.dynamic_rotate %60 by %c15_i32_31 dim 1 : vector<4x512xf32>, i32 -> vector<4x512xf32>
    %70 = vector.broadcast %5 : vector<1x512xf32> to vector<4x512xf32>
    %71 = arith.mulf %69, %70 : vector<4x512xf32>
    %c8_32 = arith.constant 8 : index
    %c0_33 = arith.constant 0 : index
    %72 = vector.load %arg6[%c8_32, %c0_33] : memref<36x512xf32, #tpu.memory_space<vmem>>, vector<4x512xf32>
    tpu.vector_store %arg6[%c8_32, %c0_33], %71 {strides = array<i32>} : memref<36x512xf32, #tpu.memory_space<vmem>>, vector<4x512xf32>,
    %c1_i32_34 = arith.constant 1 : i32
    %73 = tpu.dynamic_rotate %60 by %c1_i32_34 dim 1 : vector<4x512xf32>, i32 -> vector<4x512xf32>
    %74 = vector.broadcast %6 : vector<1x512xf32> to vector<4x512xf32>
    %75 = arith.mulf %73, %74 : vector<4x512xf32>
    %c12_35 = arith.constant 12 : index
    %c0_36 = arith.constant 0 : index
    %76 = vector.load %arg6[%c12_35, %c0_36] : memref<36x512xf32, #tpu.memory_space<vmem>>, vector<4x512xf32>
    tpu.vector_store %arg6[%c12_35, %c0_36], %75 {strides = array<i32>} : memref<36x512xf32, #tpu.memory_space<vmem>>, vector<4x512xf32>,
    %c16_37 = arith.constant 16 : index
    %c0_38 = arith.constant 0 : index
    %77 = vector.load %arg6[%c16_37, %c0_38] : memref<36x512xf32, #tpu.memory_space<vmem>>, vector<4x512xf32>
    tpu.vector_store %arg6[%c16_37, %c0_38], %60 {strides = array<i32>} : memref<36x512xf32, #tpu.memory_space<vmem>>, vector<4x512xf32>,
    %c511_i32_39 = arith.constant 511 : i32
    %78 = tpu.dynamic_rotate %60 by %c511_i32_39 dim 1 : vector<4x512xf32>, i32 -> vector<4x512xf32>
    %79 = vector.broadcast %7 : vector<1x512xf32> to vector<4x512xf32>
    %80 = arith.mulf %78, %79 : vector<4x512xf32>
    %c20_40 = arith.constant 20 : index
    %c0_41 = arith.constant 0 : index
    %81 = vector.load %arg6[%c20_40, %c0_41] : memref<36x512xf32, #tpu.memory_space<vmem>>, vector<4x512xf32>
    tpu.vector_store %arg6[%c20_40, %c0_41], %80 {strides = array<i32>} : memref<36x512xf32, #tpu.memory_space<vmem>>, vector<4x512xf32>,
    %c497_i32_42 = arith.constant 497 : i32
    %82 = tpu.dynamic_rotate %60 by %c497_i32_42 dim 1 : vector<4x512xf32>, i32 -> vector<4x512xf32>
    %83 = vector.broadcast %8 : vector<1x512xf32> to vector<4x512xf32>
    %84 = arith.mulf %82, %83 : vector<4x512xf32>
    %c24_43 = arith.constant 24 : index
    %c0_44 = arith.constant 0 : index
    %85 = vector.load %arg6[%c24_43, %c0_44] : memref<36x512xf32, #tpu.memory_space<vmem>>, vector<4x512xf32>
    tpu.vector_store %arg6[%c24_43, %c0_44], %84 {strides = array<i32>} : memref<36x512xf32, #tpu.memory_space<vmem>>, vector<4x512xf32>,
    %c496_i32_45 = arith.constant 496 : i32
    %86 = tpu.dynamic_rotate %60 by %c496_i32_45 dim 1 : vector<4x512xf32>, i32 -> vector<4x512xf32>
    %87 = vector.broadcast %9 : vector<1x512xf32> to vector<4x512xf32>
    %88 = arith.mulf %86, %87 : vector<4x512xf32>
    %c28_46 = arith.constant 28 : index
    %c0_47 = arith.constant 0 : index
    %89 = vector.load %arg6[%c28_46, %c0_47] : memref<36x512xf32, #tpu.memory_space<vmem>>, vector<4x512xf32>
    tpu.vector_store %arg6[%c28_46, %c0_47], %88 {strides = array<i32>} : memref<36x512xf32, #tpu.memory_space<vmem>>, vector<4x512xf32>,
    %c495_i32_48 = arith.constant 495 : i32
    %90 = tpu.dynamic_rotate %60 by %c495_i32_48 dim 1 : vector<4x512xf32>, i32 -> vector<4x512xf32>
    %91 = vector.broadcast %10 : vector<1x512xf32> to vector<4x512xf32>
    %92 = arith.mulf %90, %91 : vector<4x512xf32>
    %c32_49 = arith.constant 32 : index
    %c0_50 = arith.constant 0 : index
    %93 = vector.load %arg6[%c32_49, %c0_50] : memref<36x512xf32, #tpu.memory_space<vmem>>, vector<4x512xf32>
    tpu.vector_store %arg6[%c32_49, %c0_50], %92 {strides = array<i32>} : memref<36x512xf32, #tpu.memory_space<vmem>>, vector<4x512xf32>,
    %c1 = arith.constant 1 : index
    %c0_51 = arith.constant 0 : index
    %c0_52 = arith.constant 0 : index
    %94 = vector.load %arg3[%c1, %c0_51, %c0_52] : memref<2x4x36xf32, #tpu.memory_space<vmem>>, vector<1x4x36xf32>
    %95 = vector.shape_cast %94 : vector<1x4x36xf32> to vector<4x36xf32>
    %c0_53 = arith.constant 0 : index
    %c0_54 = arith.constant 0 : index
    %96 = vector.load %arg6[%c0_53, %c0_54] : memref<36x512xf32, #tpu.memory_space<vmem>>, vector<36x512xf32>
    %cst_55 = arith.constant dense<0.000000e+00> : vector<4x512xf32>
    %97 = tpu.matmul %95, %96, %cst_55 {dimension_numbers = #tpu.dot_dimension_numbers<[1], [0], [0], [1], [0, 0, 1, 1], [], []>} : vector<4x36xf32>, vector<36x512xf32>, vector<4x512xf32> -> vector<4x512xf32>
    %c1_56 = arith.constant 1 : index
    %c0_57 = arith.constant 0 : index
    %c0_58 = arith.constant 0 : index
    %98 = vector.load %arg4[%c1_56, %c0_57, %c0_58] : memref<2x4x1xf32, #tpu.memory_space<vmem>>, vector<1x4x1xf32>
    %99 = vector.shape_cast %98 : vector<1x4x1xf32> to vector<4x1xf32>
    %100 = vector.broadcast %99 : vector<4x1xf32> to vector<4x512xf32>
    %101 = arith.addf %97, %100 : vector<4x512xf32>
    %cst_59 = arith.constant 0.000000e+00 : f32
    %102 = vector.broadcast %cst_59 : f32 to vector<4x512xf32>
    %103 = arith.cmpf ogt, %101, %102 : vector<4x512xf32>
    %cst_60 = arith.constant 0.000000e+00 : f32
    %104 = vector.broadcast %cst_60 : f32 to vector<4x512xf32>
    %105 = arith.minimumf %101, %104 : vector<4x512xf32>
    %106 = math.exp %105 : vector<4x512xf32>
    %cst_61 = arith.constant 1.000000e+00 : f32
    %107 = vector.broadcast %cst_61 : f32 to vector<4x512xf32>
    %108 = arith.subf %106, %107 : vector<4x512xf32>
    %109 = arith.select %103, %101, %108 : vector<4x512xi1>, vector<4x512xf32>
    %110 = arith.addf %60, %109 : vector<4x512xf32>
    %c0_62 = arith.constant 0 : index
    %c0_63 = arith.constant 0 : index
    %c0_64 = arith.constant 0 : index
    %111 = vector.load %arg5[%c0_62, %c0_63, %c0_64] : memref<1x4x512xf32, #tpu.memory_space<vmem>>, vector<1x4x512xf32>
    %112 = vector.shape_cast %111 : vector<1x4x512xf32> to vector<4x512xf32>
    %113 = vector.shape_cast %110 : vector<4x512xf32> to vector<1x4x512xf32>
    tpu.vector_store %arg5[%c0_62, %c0_63, %c0_64], %113 {strides = array<i32>} : memref<1x4x512xf32, #tpu.memory_space<vmem>>, vector<1x4x512xf32>,
    return
  }
  func.func @transform_0(%arg0: i32) -> (i32, i32, i32) {
    %c0_i32 = arith.constant 0 : i32
    %c0_i32_0 = arith.constant 0 : i32
    %c0_i32_1 = arith.constant 0 : i32
    return %arg0, %c0_i32, %c0_i32_0 : i32, i32, i32
  }
  func.func @transform_1(%arg0: i32) -> (i32, i32) {
    %c0_i32 = arith.constant 0 : i32
    %c0_i32_0 = arith.constant 0 : i32
    %c0_i32_1 = arith.constant 0 : i32
    return %c0_i32, %c0_i32_0 : i32, i32
  }
  func.func @transform_2(%arg0: i32) -> (i32, i32, i32) {
    %c0_i32 = arith.constant 0 : i32
    %c0_i32_0 = arith.constant 0 : i32
    %c0_i32_1 = arith.constant 0 : i32
    %c0_i32_2 = arith.constant 0 : i32
    return %c0_i32, %c0_i32_0, %c0_i32_1 : i32, i32, i32
  }
  func.func @transform_3(%arg0: i32) -> (i32, i32, i32) {
    %c0_i32 = arith.constant 0 : i32
    %c0_i32_0 = arith.constant 0 : i32
    %c0_i32_1 = arith.constant 0 : i32
    %c0_i32_2 = arith.constant 0 : i32
    return %c0_i32, %c0_i32_0, %c0_i32_1 : i32, i32, i32
  }
  func.func @transform_4(%arg0: i32) -> (i32, i32, i32) {
    %c0_i32 = arith.constant 0 : i32
    %c0_i32_0 = arith.constant 0 : i32
    %c0_i32_1 = arith.constant 0 : i32
    return %arg0, %c0_i32, %c0_i32_0 : i32, i32, i32
  }
}

</mosaic_0001>

<llo_original>
// kernel: tpu_custom_call.1
$region0: #{tpu_custom_call.1}
  #allocation0 [shape = 'u32[]', space=smem, size = 0x4, offset = 0x4, fixed_abs, tag = 'smem constant byte address 0x4 - core index']
  #allocation1 [shape = 'u32[72,128]{1,0:T(1,128)}', space=vmem, size = 0x9000, scoped, tag = 'internal scratch']
  #allocation2 [shape = 'f32[36,512]{1,0:T(8,128)}', space=vmem, size = 0x14000, scoped, tag = 'scratch operand']
  %s0 = inlined_call_operand.hbm [shape: f32[2,4,512], index: 0, kind: input, shape index: {}]
  %s1 = inlined_call_operand.hbm [shape: f32[9,512], index: 1, kind: input, shape index: {}]
  %s2 = inlined_call_operand.vmem [shape: f32[2,4,36], index: 2, kind: input, shape index: {}]
  %s3 = inlined_call_operand.vmem [shape: f32[2,4,1], index: 3, kind: input, shape index: {}]
  %s4 = inlined_call_operand.hbm [shape: f32[2,4,512], index: 4, kind: output, shape index: {}]
  %s5 = sld [smem:[#allocation0]]
  $region57: #{tpu_custom_call.1} parent=0
    _
  %s7 = ssub.s32 1, %s5
  %s8 = scalar_select 0, %s7, %s5
  $region1: #{tpu_custom_call.1} parent=0
    #allocation3 [shape = 'u8[16384]{0}', space=vmem, size = 0x4000, scoped, tag = 'input window, operand 0']
    #allocation4 [shape = 's32[2]{0}', space=sflag, size = 0x8, scoped, tag = 'scoped memory for tpu_custom_call.1']
    #allocation5 [shape = 's32[2]{0}', space=sflag, size = 0x8, scoped, tag = 'scoped memory for tpu_custom_call.1']
    #allocation6 [shape = 'u8[32768]{0}', space=vmem, size = 0x8000, scoped, tag = 'input window, operand 1, single buffered']
    #allocation7 [shape = 's32[1]{0}', space=sflag, size = 0x4, scoped, tag = 'scoped memory for tpu_custom_call.1']
    #allocation8 [shape = 'u8[16384]{0}', space=vmem, size = 0x4000, scoped, tag = 'output window, operand 0']
    %9 = vsyncpa [#allocation4], 0
    %s10 = scalar_lea.sflag [#allocation4], 1
    %11 = vsyncpa %s10, 0
    %12 = vsyncpa [#allocation7], 0
    %13 = vsyncpa [#allocation5], 0
    %s14 = scalar_lea.sflag [#allocation5], 1
    %15 = vsyncpa %s14, 0
    loop: start=0, step=1, limit=4
    $region2: #{tpu_custom_call.1} parent=1 // loop_pre_header
      _
    $region3: #{tpu_custom_call.1} parent=1 // loop_header
      %s17 = sphi 0, %s21
      %p18 = scmp.ge.s32.totalorder %s17, 4
      %s27 = sphi 0, %s29
      %s30 = sphi 0, %s27
      %s31 = sphi 0, %s30
      %s47 = sphi 0, %s31
      %s51 = sphi 0, %s51
      %s53 = sphi 0, %s51
      %s54 = sphi 0, %s53
      %s68 = sphi 0, %s54
      %s72 = sphi 0, %s72
      %s74 = sphi 0, %s72
      %s75 = sphi 0, %s74
      %s89 = sphi 0, %s75
      %s93 = sphi 0, %s93
      %s95 = sphi 0, %s93
      %s96 = sphi 0, %s95
      %s110 = sphi 0, %s96
      %s116 = sphi 0, %s118
      %s119 = sphi 0, %s116
      %s120 = sphi 0, %s119
      %s136 = sphi 0, %s120
    $region4: #{tpu_custom_call.1} parent=1 // loop_header_branch
      %20 = sbr.rel (%p18) target = $region8
    $region5: #{tpu_custom_call.1} parent=1 // loop_body
      %s22 = ssub.s32 %s17, 1
      %s23 = ssub.s32 %s17, 2
      %s24 = sadd.s32 %s17, 1
      %s25 = ssub.s32 %s17, %s24
      %p26 = scmp.eq.s32.totalorder %s25, 0
      %s28 = sadd.s32 %s27, 1
      %s29 = scalar_select %p26, %s27, %s28
      %p32 = pneg %p26
      %p33 = scmp.eq.s32.totalorder %s17, 1
      %p34 = por %p32, %p33
      %p35 = scmp.ne.s32.totalorder %s27, %s30
      %p36 = scmp.eq.s32.totalorder %s17, 0
      %p37 = por %p35, %p36
      %p38 = scmp.ne.s32.totalorder %s27, %s30
      %p39 = scmp.eq.s32.totalorder %s22, 1
      %p40 = por %p38, %p39
      %p41 = scmp.ne.s32.totalorder %s30, %s31
      %p42 = scmp.eq.s32.totalorder %s22, 0
      %p43 = por %p41, %p42
      %p44 = scmp.ne.s32.totalorder %s30, %s31
      %p45 = scmp.eq.s32.totalorder %s23, 1
      %p46 = por %p44, %p45
      %p48 = scmp.ne.s32.totalorder %s31, %s47
      %p49 = scmp.eq.s32.totalorder %s23, 0
      %p50 = por %p48, %p49
      %s52 = sadd.s32 %s51, 1
      %p55 = scmp.eq.s32.totalorder %s17, 1
      %p56 = scmp.ne.s32.totalorder %s51, %s53
      %p57 = scmp.eq.s32.totalorder %s17, 0
      %p58 = por %p56, %p57
      %p59 = scmp.ne.s32.totalorder %s51, %s53
      %p60 = scmp.eq.s32.totalorder %s22, 1
      %p61 = por %p59, %p60
      %p62 = scmp.ne.s32.totalorder %s53, %s54
      %p63 = scmp.eq.s32.totalorder %s22, 0
      %p64 = por %p62, %p63
      %p65 = scmp.ne.s32.totalorder %s53, %s54
      %p66 = scmp.eq.s32.totalorder %s23, 1
      %p67 = por %p65, %p66
      %p69 = scmp.ne.s32.totalorder %s54, %s68
      %p70 = scmp.eq.s32.totalorder %s23, 0
      %p71 = por %p69, %p70
      %s73 = sadd.s32 %s72, 1
      %p76 = scmp.eq.s32.totalorder %s17, 1
      %p77 = scmp.ne.s32.totalorder %s72, %s74
      %p78 = scmp.eq.s32.totalorder %s17, 0
      %p79 = por %p77, %p78
      %p80 = scmp.ne.s32.totalorder %s72, %s74
      %p81 = scmp.eq.s32.totalorder %s22, 1
      %p82 = por %p80, %p81
      %p83 = scmp.ne.s32.totalorder %s74, %s75
      %p84 = scmp.eq.s32.totalorder %s22, 0
      %p85 = por %p83, %p84
      %p86 = scmp.ne.s32.totalorder %s74, %s75
      %p87 = scmp.eq.s32.totalorder %s23, 1
      %p88 = por %p86, %p87
      %p90 = scmp.ne.s32.totalorder %s75, %s89
      %p91 = scmp.eq.s32.totalorder %s23, 0
      %p92 = por %p90, %p91
      %s94 = sadd.s32 %s93, 1
      %p97 = scmp.eq.s32.totalorder %s17, 1
      %p98 = scmp.ne.s32.totalorder %s93, %s95
      %p99 = scmp.eq.s32.totalorder %s17, 0
      %p100 = por %p98, %p99
      %p101 = scmp.ne.s32.totalorder %s93, %s95
      %p102 = scmp.eq.s32.totalorder %s22, 1
      %p103 = por %p101, %p102
      %p104 = scmp.ne.s32.totalorder %s95, %s96
      %p105 = scmp.eq.s32.totalorder %s22, 0
      %p106 = por %p104, %p105
      %p107 = scmp.ne.s32.totalorder %s95, %s96
      %p108 = scmp.eq.s32.totalorder %s23, 1
      %p109 = por %p107, %p108
      %p111 = scmp.ne.s32.totalorder %s96, %s110
      %p112 = scmp.eq.s32.totalorder %s23, 0
      %p113 = por %p111, %p112
      %s114 = ssub.s32 %s17, %s24
      %p115 = scmp.eq.s32.totalorder %s114, 0
      %s117 = sadd.s32 %s116, 1
      %s118 = scalar_select %p115, %s116, %s117
      %p121 = pneg %p115
      %p122 = scmp.eq.s32.totalorder %s17, 1
      %p123 = por %p121, %p122
      %p124 = scmp.ne.s32.totalorder %s116, %s119
      %p125 = scmp.eq.s32.totalorder %s17, 0
      %p126 = por %p124, %p125
      %p127 = scmp.ne.s32.totalorder %s116, %s119
      %p128 = scmp.eq.s32.totalorder %s22, 1
      %p129 = por %p127, %p128
      %p130 = scmp.ne.s32.totalorder %s119, %s120
      %p131 = scmp.eq.s32.totalorder %s22, 0
      %p132 = por %p130, %p131
      %p133 = scmp.ne.s32.totalorder %s119, %s120
      %p134 = scmp.eq.s32.totalorder %s23, 1
      %p135 = por %p133, %p134
      %p137 = scmp.ne.s32.totalorder %s120, %s136
      %p138 = scmp.eq.s32.totalorder %s23, 0
      %p139 = por %p137, %p138
      %p140 = scmp.le.s32.totalorder 1, %s17
      %p141 = scmp.lt.s32.totalorder %s17, 3
      %p142 = pnand %p140, %p141
      %p143 = pneg %p142
      // Predicated region
      $region9: #{tpu_custom_call.1} parent=5 // pred_check
        _
      $region10: #{tpu_custom_call.1} parent=5 // pred_check_branch
        %145 = sbr.rel (%p142) target = $region12
      $region11: #{tpu_custom_call.1} parent=5 // pred_region
        %s146 = ssub.s32 %s17, 1
        // Predicated region
        $region13: #{tpu_custom_call.1} parent=11 // pred_check
          %p147 = pneg %p64
        $region14: #{tpu_custom_call.1} parent=11 // pred_check_branch
          %149 = sbr.rel (%p147) target = $region16
        $region15: #{tpu_custom_call.1} parent=11 // pred_region
          %151 = vsyncadd [#allocation7], 0
          %s152 = sshll.u32 %s1, 4
          %s153 = int_to_ptr.hbm [resolvable:$true] %s152
          %s154 = sshll.u32 [#allocation6], 4
          %s155 = int_to_ptr.vmem [resolvable:$true] %s154
          %160 = dma.hbm_to_vmem [thread:$0]  %s153, 1024, %s155, [#allocation7], 512, 512, 32
        $region16: #{tpu_custom_call.1} parent=11 // pred_fallthru
          _
        // Predicated region
        $region17: #{tpu_custom_call.1} parent=11 // pred_check
          %p161 = pneg %p85
        $region18: #{tpu_custom_call.1} parent=11 // pred_check_branch
          %163 = sbr.rel (%p161) target = $region20
        $region19: #{tpu_custom_call.1} parent=11 // pred_region
          _
        $region20: #{tpu_custom_call.1} parent=11 // pred_fallthru
          _
        // Predicated region
        $region21: #{tpu_custom_call.1} parent=11 // pred_check
          %p164 = pneg %p106
        $region22: #{tpu_custom_call.1} parent=11 // pred_check_branch
          %166 = sbr.rel (%p164) target = $region24
        $region23: #{tpu_custom_call.1} parent=11 // pred_region
          _
        $region24: #{tpu_custom_call.1} parent=11 // pred_fallthru
          _
      $region12: #{tpu_custom_call.1} parent=5 // pred_fallthru
        _
      %p167 = scmp.lt.s32.totalorder %s17, 2
      // Predicated region
      $region25: #{tpu_custom_call.1} parent=5 // pred_check
        %p168 = pneg %p167
      $region26: #{tpu_custom_call.1} parent=5 // pred_check_branch
        %170 = sbr.rel (%p168) target = $region28
      $region27: #{tpu_custom_call.1} parent=5 // pred_region
        // Predicated region
        $region29: #{tpu_custom_call.1} parent=27 // pred_check
          %p171 = pneg %p37
        $region30: #{tpu_custom_call.1} parent=27 // pred_check_branch
          %173 = sbr.rel (%p171) target = $region32
        $region31: #{tpu_custom_call.1} parent=27 // pred_region
          %s174 = sand.u32 %s27, 1
          %s175 = scalar_lea.sflag [#allocation4], %s174
          %s176 = sand.u32 %s27, 1
          %s177 = smul.addr %s176, 16
          %s178 = scalar_lea.vmem [#allocation3], %s177
          %180 = vsyncadd %s175, 0
          %s181 = smul.addr %s17, 4
          %s182 = smul.addr %s181, 4
          %s183 = scalar_lea.hbm %s0, %s182
          %s185 = sshll.u32 %s183, 4
          %s186 = int_to_ptr.hbm [resolvable:$true] %s185
          %s187 = sshll.u32 %s178, 4
          %s188 = int_to_ptr.vmem [resolvable:$true] %s187
          %190 = dma.hbm_to_vmem [thread:$0]  %s186, 256, %s188, %s175
        $region32: #{tpu_custom_call.1} parent=27 // pred_fallthru
          _
      $region28: #{tpu_custom_call.1} parent=5 // pred_fallthru
        _
      %p191 = scmp.le.s32.totalorder 1, %s17
      %p192 = scmp.lt.s32.totalorder %s17, 3
      %p193 = pnand %p191, %p192
      %p194 = pneg %p193
      // Predicated region
      $region33: #{tpu_custom_call.1} parent=5 // pred_check
        _
      $region34: #{tpu_custom_call.1} parent=5 // pred_check_branch
        %196 = sbr.rel (%p193) target = $region36
      $region35: #{tpu_custom_call.1} parent=5 // pred_region
        %s197 = ssub.s32 %s17, 1
        %s198 = sand.u32 %s30, 1
        %s199 = scalar_lea.sflag [#allocation4], %s198
        %s200 = sand.u32 %s30, 1
        %s201 = smul.addr %s200, 16
        %s202 = scalar_lea.vmem [#allocation3], %s201
        // Predicated region
        $region37: #{tpu_custom_call.1} parent=35 // pred_check
          %p203 = pneg %p43
        $region38: #{tpu_custom_call.1} parent=35 // pred_check_branch
          %205 = sbr.rel (%p203) target = $region40
        $region39: #{tpu_custom_call.1} parent=35 // pred_region
          %207 = dma.done %s199, 256
        $region40: #{tpu_custom_call.1} parent=35 // pred_fallthru
          _
        // Predicated region
        $region41: #{tpu_custom_call.1} parent=35 // pred_check
          %p208 = pneg %p64
        $region42: #{tpu_custom_call.1} parent=35 // pred_check_branch
          %210 = sbr.rel (%p208) target = $region44
        $region43: #{tpu_custom_call.1} parent=35 // pred_region
          %212 = dma.done [#allocation7], 1024
        $region44: #{tpu_custom_call.1} parent=35 // pred_fallthru
          _
        %s213 = sand.u32 %s30, 1
        %s214 = scalar_lea.sflag [#allocation4], %s213
        %s215 = sand.u32 %s30, 1
        %s216 = smul.addr %s215, 16
        %s217 = scalar_lea.vmem [#allocation3], %s216
        %p218 = pneg %p43
        %p219 = pneg %p40
        %p220 = pneg %p64
        %p221 = pneg %p61
        %p222 = pneg %p85
        %p223 = pneg %p82
        %p224 = pneg %p106
        %p225 = pneg %p103
        %p226 = pneg %p132
        %p227 = pneg %p129
        %s228 = sand.u32 %s119, 1
        %s229 = scalar_lea.sflag [#allocation5], %s228
        %s230 = sand.u32 %s119, 1
        %s231 = smul.addr %s230, 16
        %s232 = scalar_lea.vmem [#allocation8], %s231
        %v233 = vld [vmem:[%s202] sm:$0xff]
        %v234 = vld [vmem:[%s202 + $0x8] sm:$0xff]
        %v235 = vld [vmem:[#allocation6] sm:$0xff]
        %v236 = vld [vmem:[#allocation6 + $0x8] sm:$0xff]
        %v237 = vld [vmem:[#allocation6 + $0x10] sm:$0xff]
        %v238 = vld [vmem:[#allocation6 + $0x18] sm:$0xff]
        %v239 = vld [vmem:[#allocation6 + $0x20] sm:$0x1]
        %v240 = vld [vmem:[#allocation6 + $0x28] sm:$0x1]
        %v241 = vld [vmem:[#allocation6 + $0x30] sm:$0x1]
        %v242 = vld [vmem:[#allocation6 + $0x38] sm:$0x1]
        %245 = vst [vmem:[#allocation1] ss:$2 sm:$0xff] %v233
        %s246 = scalar_lea.vmem [#allocation1], 16
        %247 = vst [vmem:[%s246] ss:$2 sm:$0xff] %v234
        %v248 = vld.sshfl [vmem:[#allocation1] sm:$0xff pattern:$0x75316420]
        %v249 = vld.sshfl [vmem:[#allocation1 + $0x8] sm:$0xff pattern:$0x75316420]
        %v250 = vld.sshfl [vmem:[#allocation1 + $0x10] sm:$0xff pattern:$0x75316420]
        %v251 = vld.sshfl [vmem:[#allocation1 + $0x18] sm:$0xff pattern:$0x75316420]
        %256 = vrot.lane.b32.xlu0 %v248, 17
        %v257 = vpop.permute.xlu0 %256
        %258 = vrot.lane.b32.xlu0 %v249, 17
        %v259 = vpop.permute.xlu0 %258
        %260 = vrot.lane.b32.xlu0 %v250, 17
        %v261 = vpop.permute.xlu0 %260
        %262 = vrot.lane.b32.xlu0 %v251, 17
        %v263 = vpop.permute.xlu0 %262
        %v264 = vlaneseq
        %v265 = vand.u32 %v264, 127
        %vm266 = vcmp.lt.s32.totalorder %v265, 17
        %v267 = vsel %vm266, %v261, %v263
        %v268 = vsel %vm266, %v259, %v261
        %v269 = vsel %vm266, %v257, %v259
        %v270 = vsel %vm266, %v263, %v257
        %v271 = vperm.slane %v235, 0
        %v272 = vperm.slane %v236, 0
        %v273 = vperm.slane %v237, 0
        %v274 = vperm.slane %v238, 0
        %v275 = vmul.f32 %v270, %v271
        %v276 = vmul.f32 %v269, %v272
        %v277 = vmul.f32 %v268, %v273
        %v278 = vmul.f32 %v267, %v274
        %279 = vst [vmem:[#allocation2] sm:$0xf] %v275
        %280 = vst [vmem:[#allocation2 + $0x8] sm:$0xf] %v276
        %281 = vst [vmem:[#allocation2 + $0x10] sm:$0xf] %v277
        %282 = vst [vmem:[#allocation2 + $0x18] sm:$0xf] %v278
        %283 = vst [vmem:[#allocation1] ss:$2 sm:$0xff] %v233
        %s284 = scalar_lea.vmem [#allocation1], 16
        %285 = vst [vmem:[%s284] ss:$2 sm:$0xff] %v234
        %v286 = vld.sshfl [vmem:[#allocation1] sm:$0xff pattern:$0x75316420]
        %v287 = vld.sshfl [vmem:[#allocation1 + $0x8] sm:$0xff pattern:$0x75316420]
        %v288 = vld.sshfl [vmem:[#allocation1 + $0x10] sm:$0xff pattern:$0x75316420]
        %v289 = vld.sshfl [vmem:[#allocation1 + $0x18] sm:$0xff pattern:$0x75316420]
        %294 = vrot.lane.b32.xlu0 %v286, 16
        %v295 = vpop.permute.xlu0 %294
        %296 = vrot.lane.b32.xlu0 %v287, 16
        %v297 = vpop.permute.xlu0 %296
        %298 = vrot.lane.b32.xlu0 %v288, 16
        %v299 = vpop.permute.xlu0 %298
        %300 = vrot.lane.b32.xlu0 %v289, 16
        %v301 = vpop.permute.xlu0 %300
        %vm302 = vcmp.lt.s32.totalorder %v265, 16
        %v303 = vsel %vm302, %v299, %v301
        %v304 = vsel %vm302, %v297, %v299
        %v305 = vsel %vm302, %v295, %v297
        %v306 = vsel %vm302, %v301, %v295
        %v307 = vperm.slane %v235, 1
        %v308 = vperm.slane %v236, 1
        %v309 = vperm.slane %v237, 1
        %v310 = vperm.slane %v238, 1
        %v311 = vmul.f32 %v306, %v307
        %v312 = vmul.f32 %v305, %v308
        %v313 = vmul.f32 %v304, %v309
        %v314 = vmul.f32 %v303, %v310
        %v319 = vrot.slane %v311, 4
        %v320 = vrot.slane %v312, 4
        %v321 = vrot.slane %v313, 4
        %v322 = vrot.slane %v314, 4
        %327 = vst [vmem:[#allocation2] sm:$0xf0] %v319
        %328 = vst [vmem:[#allocation2 + $0x8] sm:$0xf0] %v320
        %329 = vst [vmem:[#allocation2 + $0x10] sm:$0xf0] %v321
        %330 = vst [vmem:[#allocation2 + $0x18] sm:$0xf0] %v322
        %331 = vst [vmem:[#allocation1] ss:$2 sm:$0xff] %v233
        %s332 = scalar_lea.vmem [#allocation1], 16
        %333 = vst [vmem:[%s332] ss:$2 sm:$0xff] %v234
        %v334 = vld.sshfl [vmem:[#allocation1] sm:$0xff pattern:$0x75316420]
        %v335 = vld.sshfl [vmem:[#allocation1 + $0x8] sm:$0xff pattern:$0x75316420]
        %v336 = vld.sshfl [vmem:[#allocation1 + $0x10] sm:$0xff pattern:$0x75316420]
        %v337 = vld.sshfl [vmem:[#allocation1 + $0x18] sm:$0xff pattern:$0x75316420]
        %342 = vrot.lane.b32.xlu0 %v334, 15
        %v343 = vpop.permute.xlu0 %342
        %344 = vrot.lane.b32.xlu0 %v335, 15
        %v345 = vpop.permute.xlu0 %344
        %346 = vrot.lane.b32.xlu0 %v336, 15
        %v347 = vpop.permute.xlu0 %346
        %348 = vrot.lane.b32.xlu0 %v337, 15
        %v349 = vpop.permute.xlu0 %348
        %vm350 = vcmp.lt.s32.totalorder %v265, 15
        %v351 = vsel %vm350, %v347, %v349
        %v352 = vsel %vm350, %v345, %v347
        %v353 = vsel %vm350, %v343, %v345
        %v354 = vsel %vm350, %v349, %v343
        %v355 = vperm.slane %v235, 2
        %v356 = vperm.slane %v236, 2
        %v357 = vperm.slane %v237, 2
        %v358 = vperm.slane %v238, 2
        %v359 = vmul.f32 %v354, %v355
        %v360 = vmul.f32 %v353, %v356
        %v361 = vmul.f32 %v352, %v357
        %v362 = vmul.f32 %v351, %v358
        %363 = vst [vmem:[#allocation2 + $0x20] sm:$0xf] %v359
        %364 = vst [vmem:[#allocation2 + $0x28] sm:$0xf] %v360
        %365 = vst [vmem:[#allocation2 + $0x30] sm:$0xf] %v361
        %366 = vst [vmem:[#allocation2 + $0x38] sm:$0xf] %v362
        %367 = vst [vmem:[#allocation1] ss:$2 sm:$0xff] %v233
        %s368 = scalar_lea.vmem [#allocation1], 16
        %369 = vst [vmem:[%s368] ss:$2 sm:$0xff] %v234
        %v370 = vld.sshfl [vmem:[#allocation1] sm:$0xff pattern:$0x75316420]
        %v371 = vld.sshfl [vmem:[#allocation1 + $0x8] sm:$0xff pattern:$0x75316420]
        %v372 = vld.sshfl [vmem:[#allocation1 + $0x10] sm:$0xff pattern:$0x75316420]
        %v373 = vld.sshfl [vmem:[#allocation1 + $0x18] sm:$0xff pattern:$0x75316420]
        %378 = vrot.lane.b32.xlu0 %v370, 1
        %v379 = vpop.permute.xlu0 %378
        %380 = vrot.lane.b32.xlu0 %v371, 1
        %v381 = vpop.permute.xlu0 %380
        %382 = vrot.lane.b32.xlu0 %v372, 1
        %v383 = vpop.permute.xlu0 %382
        %384 = vrot.lane.b32.xlu0 %v373, 1
        %v385 = vpop.permute.xlu0 %384
        %vm386 = vcmp.lt.s32.totalorder %v265, 1
        %v387 = vsel %vm386, %v383, %v385
        %v388 = vsel %vm386, %v381, %v383
        %v389 = vsel %vm386, %v379, %v381
        %v390 = vsel %vm386, %v385, %v379
        %v391 = vperm.slane %v235, 3
        %v392 = vperm.slane %v236, 3
        %v393 = vperm.slane %v237, 3
        %v394 = vperm.slane %v238, 3
        %v395 = vmul.f32 %v390, %v391
        %v396 = vmul.f32 %v389, %v392
        %v397 = vmul.f32 %v388, %v393
        %v398 = vmul.f32 %v387, %v394
        %v403 = vrot.slane %v395, 4
        %v404 = vrot.slane %v396, 4
        %v405 = vrot.slane %v397, 4
        %v406 = vrot.slane %v398, 4
        %411 = vst [vmem:[#allocation2 + $0x20] sm:$0xf0] %v403
        %412 = vst [vmem:[#allocation2 + $0x28] sm:$0xf0] %v404
        %413 = vst [vmem:[#allocation2 + $0x30] sm:$0xf0] %v405
        %414 = vst [vmem:[#allocation2 + $0x38] sm:$0xf0] %v406
        %415 = vst [vmem:[#allocation1] ss:$2 sm:$0xff] %v233
        %s416 = scalar_lea.vmem [#allocation1], 16
        %417 = vst [vmem:[%s416] ss:$2 sm:$0xff] %v234
        %v418 = vld.sshfl [vmem:[#allocation1] sm:$0xff pattern:$0x75316420]
        %v419 = vld.sshfl [vmem:[#allocation1 + $0x8] sm:$0xff pattern:$0x75316420]
        %v420 = vld.sshfl [vmem:[#allocation1 + $0x10] sm:$0xff pattern:$0x75316420]
        %v421 = vld.sshfl [vmem:[#allocation1 + $0x18] sm:$0xff pattern:$0x75316420]
        %426 = vst [vmem:[#allocation2 + $0x40] sm:$0xf] %v418
        %427 = vst [vmem:[#allocation2 + $0x48] sm:$0xf] %v419
        %428 = vst [vmem:[#allocation2 + $0x50] sm:$0xf] %v420
        %429 = vst [vmem:[#allocation2 + $0x58] sm:$0xf] %v421
        %430 = vst [vmem:[#allocation1] ss:$2 sm:$0xff] %v233
        %s431 = scalar_lea.vmem [#allocation1], 16
        %432 = vst [vmem:[%s431] ss:$2 sm:$0xff] %v234
        %v433 = vld.sshfl [vmem:[#allocation1] sm:$0xff pattern:$0x75316420]
        %v434 = vld.sshfl [vmem:[#allocation1 + $0x8] sm:$0xff pattern:$0x75316420]
        %v435 = vld.sshfl [vmem:[#allocation1 + $0x10] sm:$0xff pattern:$0x75316420]
        %v436 = vld.sshfl [vmem:[#allocation1 + $0x18] sm:$0xff pattern:$0x75316420]
        %441 = vrot.lane.b32.xlu0 %v433, 127
        %v442 = vpop.permute.xlu0 %441
        %443 = vrot.lane.b32.xlu0 %v434, 127
        %v444 = vpop.permute.xlu0 %443
        %445 = vrot.lane.b32.xlu0 %v435, 127
        %v446 = vpop.permute.xlu0 %445
        %447 = vrot.lane.b32.xlu0 %v436, 127
        %v448 = vpop.permute.xlu0 %447
        %vm449 = vcmp.lt.s32.totalorder %v265, 127
        %v450 = vsel %vm449, %v446, %v448
        %v451 = vsel %vm449, %v444, %v446
        %v452 = vsel %vm449, %v442, %v444
        %v453 = vsel %vm449, %v448, %v442
        %v454 = vperm.slane %v235, 5
        %v455 = vperm.slane %v236, 5
        %v456 = vperm.slane %v237, 5
        %v457 = vperm.slane %v238, 5
        %v458 = vmul.f32 %v452, %v454
        %v459 = vmul.f32 %v451, %v455
        %v460 = vmul.f32 %v450, %v456
        %v461 = vmul.f32 %v453, %v457
        %v466 = vrot.slane %v458, 4
        %v467 = vrot.slane %v459, 4
        %v468 = vrot.slane %v460, 4
        %v469 = vrot.slane %v461, 4
        %474 = vst [vmem:[#allocation2 + $0x40] sm:$0xf0] %v466
        %475 = vst [vmem:[#allocation2 + $0x48] sm:$0xf0] %v467
        %476 = vst [vmem:[#allocation2 + $0x50] sm:$0xf0] %v468
        %477 = vst [vmem:[#allocation2 + $0x58] sm:$0xf0] %v469
        %478 = vst [vmem:[#allocation1] ss:$2 sm:$0xff] %v233
        %s479 = scalar_lea.vmem [#allocation1], 16
        %480 = vst [vmem:[%s479] ss:$2 sm:$0xff] %v234
        %v481 = vld.sshfl [vmem:[#allocation1] sm:$0xff pattern:$0x75316420]
        %v482 = vld.sshfl [vmem:[#allocation1 + $0x8] sm:$0xff pattern:$0x75316420]
        %v483 = vld.sshfl [vmem:[#allocation1 + $0x10] sm:$0xff pattern:$0x75316420]
        %v484 = vld.sshfl [vmem:[#allocation1 + $0x18] sm:$0xff pattern:$0x75316420]
        %489 = vrot.lane.b32.xlu0 %v481, 113
        %v490 = vpop.permute.xlu0 %489
        %491 = vrot.lane.b32.xlu0 %v482, 113
        %v492 = vpop.permute.xlu0 %491
        %493 = vrot.lane.b32.xlu0 %v483, 113
        %v494 = vpop.permute.xlu0 %493
        %495 = vrot.lane.b32.xlu0 %v484, 113
        %v496 = vpop.permute.xlu0 %495
        %vm497 = vcmp.lt.s32.totalorder %v265, 113
        %v498 = vsel %vm497, %v494, %v496
        %v499 = vsel %vm497, %v492, %v494
        %v500 = vsel %vm497, %v490, %v492
        %v501 = vsel %vm497, %v496, %v490
        %v502 = vperm.slane %v235, 6
        %v503 = vperm.slane %v236, 6
        %v504 = vperm.slane %v237, 6
        %v505 = vperm.slane %v238, 6
        %v506 = vmul.f32 %v500, %v502
        %v507 = vmul.f32 %v499, %v503
        %v508 = vmul.f32 %v498, %v504
        %v509 = vmul.f32 %v501, %v505
        %510 = vst [vmem:[#allocation2 + $0x60] sm:$0xf] %v506
        %511 = vst [vmem:[#allocation2 + $0x68] sm:$0xf] %v507
        %512 = vst [vmem:[#allocation2 + $0x70] sm:$0xf] %v508
        %513 = vst [vmem:[#allocation2 + $0x78] sm:$0xf] %v509
        %514 = vst [vmem:[#allocation1] ss:$2 sm:$0xff] %v233
        %s515 = scalar_lea.vmem [#allocation1], 16
        %516 = vst [vmem:[%s515] ss:$2 sm:$0xff] %v234
        %v517 = vld.sshfl [vmem:[#allocation1] sm:$0xff pattern:$0x75316420]
        %v518 = vld.sshfl [vmem:[#allocation1 + $0x8] sm:$0xff pattern:$0x75316420]
        %v519 = vld.sshfl [vmem:[#allocation1 + $0x10] sm:$0xff pattern:$0x75316420]
        %v520 = vld.sshfl [vmem:[#allocation1 + $0x18] sm:$0xff pattern:$0x75316420]
        %525 = vrot.lane.b32.xlu0 %v517, 112
        %v526 = vpop.permute.xlu0 %525
        %527 = vrot.lane.b32.xlu0 %v518, 112
        %v528 = vpop.permute.xlu0 %527
        %529 = vrot.lane.b32.xlu0 %v519, 112
        %v530 = vpop.permute.xlu0 %529
        %531 = vrot.lane.b32.xlu0 %v520, 112
        %v532 = vpop.permute.xlu0 %531
        %vm533 = vcmp.lt.s32.totalorder %v265, 112
        %v534 = vsel %vm533, %v530, %v532
        %v535 = vsel %vm533, %v528, %v530
        %v536 = vsel %vm533, %v526, %v528
        %v537 = vsel %vm533, %v532, %v526
        %v538 = vperm.slane %v235, 7
        %v539 = vperm.slane %v236, 7
        %v540 = vperm.slane %v237, 7
        %v541 = vperm.slane %v238, 7
        %v542 = vmul.f32 %v536, %v538
        %v543 = vmul.f32 %v535, %v539
        %v544 = vmul.f32 %v534, %v540
        %v545 = vmul.f32 %v537, %v541
        %v550 = vrot.slane %v542, 4
        %v551 = vrot.slane %v543, 4
        %v552 = vrot.slane %v544, 4
        %v553 = vrot.slane %v545, 4
        %558 = vst [vmem:[#allocation2 + $0x60] sm:$0xf0] %v550
        %559 = vst [vmem:[#allocation2 + $0x68] sm:$0xf0] %v551
        %560 = vst [vmem:[#allocation2 + $0x70] sm:$0xf0] %v552
        %561 = vst [vmem:[#allocation2 + $0x78] sm:$0xf0] %v553
        %562 = vst [vmem:[#allocation1] ss:$2 sm:$0xff] %v233
        %s563 = scalar_lea.vmem [#allocation1], 16
        %564 = vst [vmem:[%s563] ss:$2 sm:$0xff] %v234
        %v565 = vld.sshfl [vmem:[#allocation1] sm:$0xff pattern:$0x75316420]
        %v566 = vld.sshfl [vmem:[#allocation1 + $0x8] sm:$0xff pattern:$0x75316420]
        %v567 = vld.sshfl [vmem:[#allocation1 + $0x10] sm:$0xff pattern:$0x75316420]
        %v568 = vld.sshfl [vmem:[#allocation1 + $0x18] sm:$0xff pattern:$0x75316420]
        %573 = vrot.lane.b32.xlu0 %v565, 111
        %v574 = vpop.permute.xlu0 %573
        %575 = vrot.lane.b32.xlu0 %v566, 111
        %v576 = vpop.permute.xlu0 %575
        %577 = vrot.lane.b32.xlu0 %v567, 111
        %v578 = vpop.permute.xlu0 %577
        %579 = vrot.lane.b32.xlu0 %v568, 111
        %v580 = vpop.permute.xlu0 %579
        %vm581 = vcmp.lt.s32.totalorder %v265, 111
        %v582 = vsel %vm581, %v578, %v580
        %v583 = vsel %vm581, %v576, %v578
        %v584 = vsel %vm581, %v574, %v576
        %v585 = vsel %vm581, %v580, %v574
        %v586 = vperm.slane %v239, 0
        %v587 = vperm.slane %v240, 0
        %v588 = vperm.slane %v241, 0
        %v589 = vperm.slane %v242, 0
        %v590 = vmul.f32 %v584, %v586
        %v591 = vmul.f32 %v583, %v587
        %v592 = vmul.f32 %v582, %v588
        %v593 = vmul.f32 %v585, %v589
        %594 = vst [vmem:[#allocation2 + $0x80] sm:$0xf] %v590
        %595 = vst [vmem:[#allocation2 + $0x88] sm:$0xf] %v591
        %596 = vst [vmem:[#allocation2 + $0x90] sm:$0xf] %v592
        %597 = vst [vmem:[#allocation2 + $0x98] sm:$0xf] %v593
        %v598 = vld [vmem:[%s2] sm:$0xf]
        %v599 = vld [vmem:[#allocation2] sm:$0xff]
        %v600 = vld [vmem:[#allocation2 + $0x8] sm:$0xff]
        %v601 = vld [vmem:[#allocation2 + $0x10] sm:$0xff]
        %v602 = vld [vmem:[#allocation2 + $0x18] sm:$0xff]
        %v603 = vld [vmem:[#allocation2 + $0x20] sm:$0xff]
        %v604 = vld [vmem:[#allocation2 + $0x28] sm:$0xff]
        %v605 = vld [vmem:[#allocation2 + $0x30] sm:$0xff]
        %v606 = vld [vmem:[#allocation2 + $0x38] sm:$0xff]
        %v607 = vld [vmem:[#allocation2 + $0x40] sm:$0xff]
        %v608 = vld [vmem:[#allocation2 + $0x48] sm:$0xff]
        %v609 = vld [vmem:[#allocation2 + $0x50] sm:$0xff]
        %v610 = vld [vmem:[#allocation2 + $0x58] sm:$0xff]
        %v611 = vld [vmem:[#allocation2 + $0x60] sm:$0xff]
        %v612 = vld [vmem:[#allocation2 + $0x68] sm:$0xff]
        %v613 = vld [vmem:[#allocation2 + $0x70] sm:$0xff]
        %v614 = vld [vmem:[#allocation2 + $0x78] sm:$0xff]
        %v615 = vld [vmem:[#allocation2 + $0x80] sm:$0xf]
        %v616 = vld [vmem:[#allocation2 + $0x88] sm:$0xf]
        %v617 = vld [vmem:[#allocation2 + $0x90] sm:$0xf]
        %v618 = vld [vmem:[#allocation2 + $0x98] sm:$0xf]
        %v619 = vld [vmem:[%s3] sm:$0xf]
        %621 = vset.pattern.permute.xlu0 0
        %622 = vperm.xlu0 %621, %v619
        %v623 = vpop.permute.xlu0 %622
        %vm625 = vcmask 293888
        %v627 = vsel %vm625, %v598, 0
        %vm629 = vcmask 1043456
        %v631 = vsel %vm629, %v615, 0
        %v634 = vsel %vm629, %v616, 0
        %v637 = vsel %vm629, %v617, 0
        %v640 = vsel %vm629, %v618, 0
        %642 = vmatpush.msra.mxu0 0.0
        %643 = vmatpush.msra.mxu0 0.0
        %644 = vmatpush.msra.mxu0 0.0
        %645 = vmatpush.msra.mxu0 0.0
        %646 = vmatpush.msra.mxu0 0.0
        %647 = vmatpush.msra.mxu0 0.0
        %648 = vmatpush.msra.mxu0 0.0
        %649 = vmatpush.msra.mxu0 0.0
        %650 = vmatpush.msra.mxu0 0.0
        %651 = vmatpush.msra.mxu0 0.0
        %652 = vmatpush.msra.mxu0 0.0
        %653 = vmatpush.msra.mxu0 %v631
        %654 = vmatpush.msra.mxu0 %v611
        %655 = vmatpush.msra.mxu0 %v607
        %656 = vmatpush.msra.mxu0 %v603
        %657 = vmatpush.msra.mxu0 %v599
        %658 = vmatmul.f32.gmra.mxu0 %v627
        %v659 = vpop.f32.mrf.mxu0
        %v660 = vadd.f32 %v623, %v659
        %661 = vdwg.mxu0
        %662 = vmatpush.msra.mxu0 0.0
        %663 = vmatpush.msra.mxu0 0.0
        %664 = vmatpush.msra.mxu0 0.0
        %665 = vmatpush.msra.mxu0 0.0
        %666 = vmatpush.msra.mxu0 0.0
        %667 = vmatpush.msra.mxu0 0.0
        %668 = vmatpush.msra.mxu0 0.0
        %669 = vmatpush.msra.mxu0 0.0
        %670 = vmatpush.msra.mxu0 0.0
        %671 = vmatpush.msra.mxu0 0.0
        %672 = vmatpush.msra.mxu0 0.0
        %673 = vmatpush.msra.mxu0 %v634
        %674 = vmatpush.msra.mxu0 %v612
        %675 = vmatpush.msra.mxu0 %v608
        %676 = vmatpush.msra.mxu0 %v604
        %677 = vmatpush.msra.mxu0 %v600
        %678 = vmatmul.f32.gmra.mxu0 %v627
        %v679 = vpop.f32.mrf.mxu0
        %v680 = vadd.f32 %v623, %v679
        %681 = vdwg.mxu0
        %682 = vmatpush.msra.mxu0 0.0
        %683 = vmatpush.msra.mxu0 0.0
        %684 = vmatpush.msra.mxu0 0.0
        %685 = vmatpush.msra.mxu0 0.0
        %686 = vmatpush.msra.mxu0 0.0
        %687 = vmatpush.msra.mxu0 0.0
        %688 = vmatpush.msra.mxu0 0.0
        %689 = vmatpush.msra.mxu0 0.0
        %690 = vmatpush.msra.mxu0 0.0
        %691 = vmatpush.msra.mxu0 0.0
        %692 = vmatpush.msra.mxu0 0.0
        %693 = vmatpush.msra.mxu0 %v637
        %694 = vmatpush.msra.mxu0 %v613
        %695 = vmatpush.msra.mxu0 %v609
        %696 = vmatpush.msra.mxu0 %v605
        %697 = vmatpush.msra.mxu0 %v601
        %698 = vmatmul.f32.gmra.mxu0 %v627
        %v699 = vpop.f32.mrf.mxu0
        %v700 = vadd.f32 %v623, %v699
        %701 = vdwg.mxu0
        %702 = vmatpush.msra.mxu0 0.0
        %703 = vmatpush.msra.mxu0 0.0
        %704 = vmatpush.msra.mxu0 0.0
        %705 = vmatpush.msra.mxu0 0.0
        %706 = vmatpush.msra.mxu0 0.0
        %707 = vmatpush.msra.mxu0 0.0
        %708 = vmatpush.msra.mxu0 0.0
        %709 = vmatpush.msra.mxu0 0.0
        %710 = vmatpush.msra.mxu0 0.0
        %711 = vmatpush.msra.mxu0 0.0
        %712 = vmatpush.msra.mxu0 0.0
        %713 = vmatpush.msra.mxu0 %v640
        %714 = vmatpush.msra.mxu0 %v614
        %715 = vmatpush.msra.mxu0 %v610
        %716 = vmatpush.msra.mxu0 %v606
        %717 = vmatpush.msra.mxu0 %v602
        %718 = vmatmul.f32.gmra.mxu0 %v627
        %v719 = vpop.f32.mrf.mxu0
        %v720 = vadd.f32 %v623, %v719
        %721 = vdwg.mxu0
        %vm722 = vcmp.gt.f32.partialorder %v660, 0.0
        %vm723 = vcmp.gt.f32.partialorder %v680, 0.0
        %vm724 = vcmp.gt.f32.partialorder %v700, 0.0
        %vm725 = vcmp.gt.f32.partialorder %v720, 0.0
        %v726 = vmin.f32 %v660, 0.0
        %v727 = vmin.f32 %v680, 0.0
        %v728 = vmin.f32 %v700, 0.0
        %v729 = vmin.f32 %v720, 0.0
        %v730 = vmul.f32 %v726, 1.442695
        %v731 = vpow.pop %v730
        %v732 = vmul.f32 %v727, 1.442695
        %v733 = vpow.pop %v732
        %v734 = vmul.f32 %v728, 1.442695
        %v735 = vpow.pop %v734
        %v736 = vmul.f32 %v729, 1.442695
        %v737 = vpow.pop %v736
        %v738 = vsub.f32 %v731, 1.0
        %v739 = vsub.f32 %v733, 1.0
        %v740 = vsub.f32 %v735, 1.0
        %v741 = vsub.f32 %v737, 1.0
        %v742 = vsel %vm722, %v660, %v738
        %v743 = vsel %vm723, %v680, %v739
        %v744 = vsel %vm724, %v700, %v740
        %v745 = vsel %vm725, %v720, %v741
        %v750 = vrot.slane %v743, 4
        %v751 = vrot.slane %v745, 4
        %v752 = vsel %vm629, %v742, %v750
        %v753 = vsel %vm629, %v744, %v751
        %v756 = vadd.f32 %v233, %v752
        %v757 = vadd.f32 %v234, %v753
        %760 = vst [vmem:[#allocation1] ss:$2 sm:$0xff] %v756
        %s761 = scalar_lea.vmem [#allocation1], 16
        %762 = vst [vmem:[%s761] ss:$2 sm:$0xff] %v757
        %v763 = vld.sshfl [vmem:[#allocation1] sm:$0xff pattern:$0x75316420]
        %v764 = vld.sshfl [vmem:[#allocation1 + $0x8] sm:$0xff pattern:$0x75316420]
        %v765 = vld.sshfl [vmem:[#allocation1 + $0x10] sm:$0xff pattern:$0x75316420]
        %v766 = vld.sshfl [vmem:[#allocation1 + $0x18] sm:$0xff pattern:$0x75316420]
        %771 = vrot.lane.b32.xlu0 %v763, 17
        %v772 = vpop.permute.xlu0 %771
        %773 = vrot.lane.b32.xlu0 %v764, 17
        %v774 = vpop.permute.xlu0 %773
        %775 = vrot.lane.b32.xlu0 %v765, 17
        %v776 = vpop.permute.xlu0 %775
        %777 = vrot.lane.b32.xlu0 %v766, 17
        %v778 = vpop.permute.xlu0 %777
        %v779 = vsel %vm266, %v776, %v778
        %v780 = vsel %vm266, %v774, %v776
        %v781 = vsel %vm266, %v772, %v774
        %v782 = vsel %vm266, %v778, %v772
        %v783 = vmul.f32 %v782, %v271
        %v784 = vmul.f32 %v781, %v272
        %v785 = vmul.f32 %v780, %v273
        %v786 = vmul.f32 %v779, %v274
        %787 = vst [vmem:[#allocation2] sm:$0xf] %v783
        %788 = vst [vmem:[#allocation2 + $0x8] sm:$0xf] %v784
        %789 = vst [vmem:[#allocation2 + $0x10] sm:$0xf] %v785
        %790 = vst [vmem:[#allocation2 + $0x18] sm:$0xf] %v786
        %791 = vst [vmem:[#allocation1] ss:$2 sm:$0xff] %v756
        %s792 = scalar_lea.vmem [#allocation1], 16
        %793 = vst [vmem:[%s792] ss:$2 sm:$0xff] %v757
        %v794 = vld.sshfl [vmem:[#allocation1] sm:$0xff pattern:$0x75316420]
        %v795 = vld.sshfl [vmem:[#allocation1 + $0x8] sm:$0xff pattern:$0x75316420]
        %v796 = vld.sshfl [vmem:[#allocation1 + $0x10] sm:$0xff pattern:$0x75316420]
        %v797 = vld.sshfl [vmem:[#allocation1 + $0x18] sm:$0xff pattern:$0x75316420]
        %802 = vrot.lane.b32.xlu0 %v794, 16
        %v803 = vpop.permute.xlu0 %802
        %804 = vrot.lane.b32.xlu0 %v795, 16
        %v805 = vpop.permute.xlu0 %804
        %806 = vrot.lane.b32.xlu0 %v796, 16
        %v807 = vpop.permute.xlu0 %806
        %808 = vrot.lane.b32.xlu0 %v797, 16
        %v809 = vpop.permute.xlu0 %808
        %v810 = vsel %vm302, %v807, %v809
        %v811 = vsel %vm302, %v805, %v807
        %v812 = vsel %vm302, %v803, %v805
        %v813 = vsel %vm302, %v809, %v803
        %v814 = vmul.f32 %v813, %v307
        %v815 = vmul.f32 %v812, %v308
        %v816 = vmul.f32 %v811, %v309
        %v817 = vmul.f32 %v810, %v310
        %v822 = vrot.slane %v814, 4
        %v823 = vrot.slane %v815, 4
        %v824 = vrot.slane %v816, 4
        %v825 = vrot.slane %v817, 4
        %830 = vst [vmem:[#allocation2] sm:$0xf0] %v822
        %831 = vst [vmem:[#allocation2 + $0x8] sm:$0xf0] %v823
        %832 = vst [vmem:[#allocation2 + $0x10] sm:$0xf0] %v824
        %833 = vst [vmem:[#allocation2 + $0x18] sm:$0xf0] %v825
        %834 = vst [vmem:[#allocation1] ss:$2 sm:$0xff] %v756
        %s835 = scalar_lea.vmem [#allocation1], 16
        %836 = vst [vmem:[%s835] ss:$2 sm:$0xff] %v757
        %v837 = vld.sshfl [vmem:[#allocation1] sm:$0xff pattern:$0x75316420]
        %v838 = vld.sshfl [vmem:[#allocation1 + $0x8] sm:$0xff pattern:$0x75316420]
        %v839 = vld.sshfl [vmem:[#allocation1 + $0x10] sm:$0xff pattern:$0x75316420]
        %v840 = vld.sshfl [vmem:[#allocation1 + $0x18] sm:$0xff pattern:$0x75316420]
        %845 = vrot.lane.b32.xlu0 %v837, 15
        %v846 = vpop.permute.xlu0 %845
        %847 = vrot.lane.b32.xlu0 %v838, 15
        %v848 = vpop.permute.xlu0 %847
        %849 = vrot.lane.b32.xlu0 %v839, 15
        %v850 = vpop.permute.xlu0 %849
        %851 = vrot.lane.b32.xlu0 %v840, 15
        %v852 = vpop.permute.xlu0 %851
        %v853 = vsel %vm350, %v850, %v852
        %v854 = vsel %vm350, %v848, %v850
        %v855 = vsel %vm350, %v846, %v848
        %v856 = vsel %vm350, %v852, %v846
        %v857 = vmul.f32 %v856, %v355
        %v858 = vmul.f32 %v855, %v356
        %v859 = vmul.f32 %v854, %v357
        %v860 = vmul.f32 %v853, %v358
        %861 = vst [vmem:[#allocation2 + $0x20] sm:$0xf] %v857
        %862 = vst [vmem:[#allocation2 + $0x28] sm:$0xf] %v858
        %863 = vst [vmem:[#allocation2 + $0x30] sm:$0xf] %v859
        %864 = vst [vmem:[#allocation2 + $0x38] sm:$0xf] %v860
        %865 = vst [vmem:[#allocation1] ss:$2 sm:$0xff] %v756
        %s866 = scalar_lea.vmem [#allocation1], 16
        %867 = vst [vmem:[%s866] ss:$2 sm:$0xff] %v757
        %v868 = vld.sshfl [vmem:[#allocation1] sm:$0xff pattern:$0x75316420]
        %v869 = vld.sshfl [vmem:[#allocation1 + $0x8] sm:$0xff pattern:$0x75316420]
        %v870 = vld.sshfl [vmem:[#allocation1 + $0x10] sm:$0xff pattern:$0x75316420]
        %v871 = vld.sshfl [vmem:[#allocation1 + $0x18] sm:$0xff pattern:$0x75316420]
        %876 = vrot.lane.b32.xlu0 %v868, 1
        %v877 = vpop.permute.xlu0 %876
        %878 = vrot.lane.b32.xlu0 %v869, 1
        %v879 = vpop.permute.xlu0 %878
        %880 = vrot.lane.b32.xlu0 %v870, 1
        %v881 = vpop.permute.xlu0 %880
        %882 = vrot.lane.b32.xlu0 %v871, 1
        %v883 = vpop.permute.xlu0 %882
        %v884 = vsel %vm386, %v881, %v883
        %v885 = vsel %vm386, %v879, %v881
        %v886 = vsel %vm386, %v877, %v879
        %v887 = vsel %vm386, %v883, %v877
        %v888 = vmul.f32 %v887, %v391
        %v889 = vmul.f32 %v886, %v392
        %v890 = vmul.f32 %v885, %v393
        %v891 = vmul.f32 %v884, %v394
        %v896 = vrot.slane %v888, 4
        %v897 = vrot.slane %v889, 4
        %v898 = vrot.slane %v890, 4
        %v899 = vrot.slane %v891, 4
        %904 = vst [vmem:[#allocation2 + $0x20] sm:$0xf0] %v896
        %905 = vst [vmem:[#allocation2 + $0x28] sm:$0xf0] %v897
        %906 = vst [vmem:[#allocation2 + $0x30] sm:$0xf0] %v898
        %907 = vst [vmem:[#allocation2 + $0x38] sm:$0xf0] %v899
        %908 = vst [vmem:[#allocation1] ss:$2 sm:$0xff] %v756
        %s909 = scalar_lea.vmem [#allocation1], 16
        %910 = vst [vmem:[%s909] ss:$2 sm:$0xff] %v757
        %v911 = vld.sshfl [vmem:[#allocation1] sm:$0xff pattern:$0x75316420]
        %v912 = vld.sshfl [vmem:[#allocation1 + $0x8] sm:$0xff pattern:$0x75316420]
        %v913 = vld.sshfl [vmem:[#allocation1 + $0x10] sm:$0xff pattern:$0x75316420]
        %v914 = vld.sshfl [vmem:[#allocation1 + $0x18] sm:$0xff pattern:$0x75316420]
        %919 = vst [vmem:[#allocation2 + $0x40] sm:$0xf] %v911
        %920 = vst [vmem:[#allocation2 + $0x48] sm:$0xf] %v912
        %921 = vst [vmem:[#allocation2 + $0x50] sm:$0xf] %v913
        %922 = vst [vmem:[#allocation2 + $0x58] sm:$0xf] %v914
        %923 = vst [vmem:[#allocation1] ss:$2 sm:$0xff] %v756
        %s924 = scalar_lea.vmem [#allocation1], 16
        %925 = vst [vmem:[%s924] ss:$2 sm:$0xff] %v757
        %v926 = vld.sshfl [vmem:[#allocation1] sm:$0xff pattern:$0x75316420]
        %v927 = vld.sshfl [vmem:[#allocation1 + $0x8] sm:$0xff pattern:$0x75316420]
        %v928 = vld.sshfl [vmem:[#allocation1 + $0x10] sm:$0xff pattern:$0x75316420]
        %v929 = vld.sshfl [vmem:[#allocation1 + $0x18] sm:$0xff pattern:$0x75316420]
        %934 = vrot.lane.b32.xlu0 %v926, 127
        %v935 = vpop.permute.xlu0 %934
        %936 = vrot.lane.b32.xlu0 %v927, 127
        %v937 = vpop.permute.xlu0 %936
        %938 = vrot.lane.b32.xlu0 %v928, 127
        %v939 = vpop.permute.xlu0 %938
        %940 = vrot.lane.b32.xlu0 %v929, 127
        %v941 = vpop.permute.xlu0 %940
        %v942 = vsel %vm449, %v939, %v941
        %v943 = vsel %vm449, %v937, %v939
        %v944 = vsel %vm449, %v935, %v937
        %v945 = vsel %vm449, %v941, %v935
        %v946 = vmul.f32 %v944, %v454
        %v947 = vmul.f32 %v943, %v455
        %v948 = vmul.f32 %v942, %v456
        %v949 = vmul.f32 %v945, %v457
        %v954 = vrot.slane %v946, 4
        %v955 = vrot.slane %v947, 4
        %v956 = vrot.slane %v948, 4
        %v957 = vrot.slane %v949, 4
        %962 = vst [vmem:[#allocation2 + $0x40] sm:$0xf0] %v954
        %963 = vst [vmem:[#allocation2 + $0x48] sm:$0xf0] %v955
        %964 = vst [vmem:[#allocation2 + $0x50] sm:$0xf0] %v956
        %965 = vst [vmem:[#allocation2 + $0x58] sm:$0xf0] %v957
        %966 = vst [vmem:[#allocation1] ss:$2 sm:$0xff] %v756
        %s967 = scalar_lea.vmem [#allocation1], 16
        %968 = vst [vmem:[%s967] ss:$2 sm:$0xff] %v757
        %v969 = vld.sshfl [vmem:[#allocation1] sm:$0xff pattern:$0x75316420]
        %v970 = vld.sshfl [vmem:[#allocation1 + $0x8] sm:$0xff pattern:$0x75316420]
        %v971 = vld.sshfl [vmem:[#allocation1 + $0x10] sm:$0xff pattern:$0x75316420]
        %v972 = vld.sshfl [vmem:[#allocation1 + $0x18] sm:$0xff pattern:$0x75316420]
        %977 = vrot.lane.b32.xlu0 %v969, 113
        %v978 = vpop.permute.xlu0 %977
        %979 = vrot.lane.b32.xlu0 %v970, 113
        %v980 = vpop.permute.xlu0 %979
        %981 = vrot.lane.b32.xlu0 %v971, 113
        %v982 = vpop.permute.xlu0 %981
        %983 = vrot.lane.b32.xlu0 %v972, 113
        %v984 = vpop.permute.xlu0 %983
        %v985 = vsel %vm497, %v982, %v984
        %v986 = vsel %vm497, %v980, %v982
        %v987 = vsel %vm497, %v978, %v980
        %v988 = vsel %vm497, %v984, %v978
        %v989 = vmul.f32 %v987, %v502
        %v990 = vmul.f32 %v986, %v503
        %v991 = vmul.f32 %v985, %v504
        %v992 = vmul.f32 %v988, %v505
        %993 = vst [vmem:[#allocation2 + $0x60] sm:$0xf] %v989
        %994 = vst [vmem:[#allocation2 + $0x68] sm:$0xf] %v990
        %995 = vst [vmem:[#allocation2 + $0x70] sm:$0xf] %v991
        %996 = vst [vmem:[#allocation2 + $0x78] sm:$0xf] %v992
        %997 = vst [vmem:[#allocation1] ss:$2 sm:$0xff] %v756
        %s998 = scalar_lea.vmem [#allocation1], 16
        %999 = vst [vmem:[%s998] ss:$2 sm:$0xff] %v757
        %v1000 = vld.sshfl [vmem:[#allocation1] sm:$0xff pattern:$0x75316420]
        %v1001 = vld.sshfl [vmem:[#allocation1 + $0x8] sm:$0xff pattern:$0x75316420]
        %v1002 = vld.sshfl [vmem:[#allocation1 + $0x10] sm:$0xff pattern:$0x75316420]
        %v1003 = vld.sshfl [vmem:[#allocation1 + $0x18] sm:$0xff pattern:$0x75316420]
        %1008 = vrot.lane.b32.xlu0 %v1000, 112
        %v1009 = vpop.permute.xlu0 %1008
        %1010 = vrot.lane.b32.xlu0 %v1001, 112
        %v1011 = vpop.permute.xlu0 %1010
        %1012 = vrot.lane.b32.xlu0 %v1002, 112
        %v1013 = vpop.permute.xlu0 %1012
        %1014 = vrot.lane.b32.xlu0 %v1003, 112
        %v1015 = vpop.permute.xlu0 %1014
        %v1016 = vsel %vm533, %v1013, %v1015
        %v1017 = vsel %vm533, %v1011, %v1013
        %v1018 = vsel %vm533, %v1009, %v1011
        %v1019 = vsel %vm533, %v1015, %v1009
        %v1020 = vmul.f32 %v1018, %v538
        %v1021 = vmul.f32 %v1017, %v539
        %v1022 = vmul.f32 %v1016, %v540
        %v1023 = vmul.f32 %v1019, %v541
        %v1028 = vrot.slane %v1020, 4
        %v1029 = vrot.slane %v1021, 4
        %v1030 = vrot.slane %v1022, 4
        %v1031 = vrot.slane %v1023, 4
        %1036 = vst [vmem:[#allocation2 + $0x60] sm:$0xf0] %v1028
        %1037 = vst [vmem:[#allocation2 + $0x68] sm:$0xf0] %v1029
        %1038 = vst [vmem:[#allocation2 + $0x70] sm:$0xf0] %v1030
        %1039 = vst [vmem:[#allocation2 + $0x78] sm:$0xf0] %v1031
        %1040 = vst [vmem:[#allocation1] ss:$2 sm:$0xff] %v756
        %s1041 = scalar_lea.vmem [#allocation1], 16
        %1042 = vst [vmem:[%s1041] ss:$2 sm:$0xff] %v757
        %v1043 = vld.sshfl [vmem:[#allocation1] sm:$0xff pattern:$0x75316420]
        %v1044 = vld.sshfl [vmem:[#allocation1 + $0x8] sm:$0xff pattern:$0x75316420]
        %v1045 = vld.sshfl [vmem:[#allocation1 + $0x10] sm:$0xff pattern:$0x75316420]
        %v1046 = vld.sshfl [vmem:[#allocation1 + $0x18] sm:$0xff pattern:$0x75316420]
        %1051 = vrot.lane.b32.xlu0 %v1043, 111
        %v1052 = vpop.permute.xlu0 %1051
        %1053 = vrot.lane.b32.xlu0 %v1044, 111
        %v1054 = vpop.permute.xlu0 %1053
        %1055 = vrot.lane.b32.xlu0 %v1045, 111
        %v1056 = vpop.permute.xlu0 %1055
        %1057 = vrot.lane.b32.xlu0 %v1046, 111
        %v1058 = vpop.permute.xlu0 %1057
        %v1059 = vsel %vm581, %v1056, %v1058
        %v1060 = vsel %vm581, %v1054, %v1056
        %v1061 = vsel %vm581, %v1052, %v1054
        %v1062 = vsel %vm581, %v1058, %v1052
        %v1063 = vmul.f32 %v1061, %v586
        %v1064 = vmul.f32 %v1060, %v587
        %v1065 = vmul.f32 %v1059, %v588
        %v1066 = vmul.f32 %v1062, %v589
        %1067 = vst [vmem:[#allocation2 + $0x80] sm:$0xf] %v1063
        %1068 = vst [vmem:[#allocation2 + $0x88] sm:$0xf] %v1064
        %1069 = vst [vmem:[#allocation2 + $0x90] sm:$0xf] %v1065
        %1070 = vst [vmem:[#allocation2 + $0x98] sm:$0xf] %v1066
        %s1071 = scalar_lea.vmem %s2, 4
        %v1072 = vld [vmem:[%s1071] sm:$0xf]
        %v1073 = vld [vmem:[#allocation2] sm:$0xff]
        %v1074 = vld [vmem:[#allocation2 + $0x8] sm:$0xff]
        %v1075 = vld [vmem:[#allocation2 + $0x10] sm:$0xff]
        %v1076 = vld [vmem:[#allocation2 + $0x18] sm:$0xff]
        %v1077 = vld [vmem:[#allocation2 + $0x20] sm:$0xff]
        %v1078 = vld [vmem:[#allocation2 + $0x28] sm:$0xff]
        %v1079 = vld [vmem:[#allocation2 + $0x30] sm:$0xff]
        %v1080 = vld [vmem:[#allocation2 + $0x38] sm:$0xff]
        %v1081 = vld [vmem:[#allocation2 + $0x40] sm:$0xff]
        %v1082 = vld [vmem:[#allocation2 + $0x48] sm:$0xff]
        %v1083 = vld [vmem:[#allocation2 + $0x50] sm:$0xff]
        %v1084 = vld [vmem:[#allocation2 + $0x58] sm:$0xff]
        %v1085 = vld [vmem:[#allocation2 + $0x60] sm:$0xff]
        %v1086 = vld [vmem:[#allocation2 + $0x68] sm:$0xff]
        %v1087 = vld [vmem:[#allocation2 + $0x70] sm:$0xff]
        %v1088 = vld [vmem:[#allocation2 + $0x78] sm:$0xff]
        %v1089 = vld [vmem:[#allocation2 + $0x80] sm:$0xf]
        %v1090 = vld [vmem:[#allocation2 + $0x88] sm:$0xf]
        %v1091 = vld [vmem:[#allocation2 + $0x90] sm:$0xf]
        %v1092 = vld [vmem:[#allocation2 + $0x98] sm:$0xf]
        %s1093 = scalar_lea.vmem %s3, 4
        %v1094 = vld [vmem:[%s1093] sm:$0xf]
        %1096 = vset.pattern.permute.xlu0 0
        %1097 = vperm.xlu0 %1096, %v1094
        %v1098 = vpop.permute.xlu0 %1097
        %v1101 = vsel %vm625, %v1072, 0
        %v1104 = vsel %vm629, %v1089, 0
        %v1107 = vsel %vm629, %v1090, 0
        %v1110 = vsel %vm629, %v1091, 0
        %v1113 = vsel %vm629, %v1092, 0
        %1115 = vmatpush.msra.mxu0 0.0
        %1116 = vmatpush.msra.mxu0 0.0
        %1117 = vmatpush.msra.mxu0 0.0
        %1118 = vmatpush.msra.mxu0 0.0
        %1119 = vmatpush.msra.mxu0 0.0
        %1120 = vmatpush.msra.mxu0 0.0
        %1121 = vmatpush.msra.mxu0 0.0
        %1122 = vmatpush.msra.mxu0 0.0
        %1123 = vmatpush.msra.mxu0 0.0
        %1124 = vmatpush.msra.mxu0 0.0
        %1125 = vmatpush.msra.mxu0 0.0
        %1126 = vmatpush.msra.mxu0 %v1104
        %1127 = vmatpush.msra.mxu0 %v1085
        %1128 = vmatpush.msra.mxu0 %v1081
        %1129 = vmatpush.msra.mxu0 %v1077
        %1130 = vmatpush.msra.mxu0 %v1073
        %1131 = vmatmul.f32.gmra.mxu0 %v1101
        %v1132 = vpop.f32.mrf.mxu0
        %v1133 = vadd.f32 %v1098, %v1132
        %1134 = vdwg.mxu0
        %1135 = vmatpush.msra.mxu0 0.0
        %1136 = vmatpush.msra.mxu0 0.0
        %1137 = vmatpush.msra.mxu0 0.0
        %1138 = vmatpush.msra.mxu0 0.0
        %1139 = vmatpush.msra.mxu0 0.0
        %1140 = vmatpush.msra.mxu0 0.0
        %1141 = vmatpush.msra.mxu0 0.0
        %1142 = vmatpush.msra.mxu0 0.0
        %1143 = vmatpush.msra.mxu0 0.0
        %1144 = vmatpush.msra.mxu0 0.0
        %1145 = vmatpush.msra.mxu0 0.0
        %1146 = vmatpush.msra.mxu0 %v1107
        %1147 = vmatpush.msra.mxu0 %v1086
        %1148 = vmatpush.msra.mxu0 %v1082
        %1149 = vmatpush.msra.mxu0 %v1078
        %1150 = vmatpush.msra.mxu0 %v1074
        %1151 = vmatmul.f32.gmra.mxu0 %v1101
        %v1152 = vpop.f32.mrf.mxu0
        %v1153 = vadd.f32 %v1098, %v1152
        %1154 = vdwg.mxu0
        %1155 = vmatpush.msra.mxu0 0.0
        %1156 = vmatpush.msra.mxu0 0.0
        %1157 = vmatpush.msra.mxu0 0.0
        %1158 = vmatpush.msra.mxu0 0.0
        %1159 = vmatpush.msra.mxu0 0.0
        %1160 = vmatpush.msra.mxu0 0.0
        %1161 = vmatpush.msra.mxu0 0.0
        %1162 = vmatpush.msra.mxu0 0.0
        %1163 = vmatpush.msra.mxu0 0.0
        %1164 = vmatpush.msra.mxu0 0.0
        %1165 = vmatpush.msra.mxu0 0.0
        %1166 = vmatpush.msra.mxu0 %v1110
        %1167 = vmatpush.msra.mxu0 %v1087
        %1168 = vmatpush.msra.mxu0 %v1083
        %1169 = vmatpush.msra.mxu0 %v1079
        %1170 = vmatpush.msra.mxu0 %v1075
        %1171 = vmatmul.f32.gmra.mxu0 %v1101
        %v1172 = vpop.f32.mrf.mxu0
        %v1173 = vadd.f32 %v1098, %v1172
        %1174 = vdwg.mxu0
        %1175 = vmatpush.msra.mxu0 0.0
        %1176 = vmatpush.msra.mxu0 0.0
        %1177 = vmatpush.msra.mxu0 0.0
        %1178 = vmatpush.msra.mxu0 0.0
        %1179 = vmatpush.msra.mxu0 0.0
        %1180 = vmatpush.msra.mxu0 0.0
        %1181 = vmatpush.msra.mxu0 0.0
        %1182 = vmatpush.msra.mxu0 0.0
        %1183 = vmatpush.msra.mxu0 0.0
        %1184 = vmatpush.msra.mxu0 0.0
        %1185 = vmatpush.msra.mxu0 0.0
        %1186 = vmatpush.msra.mxu0 %v1113
        %1187 = vmatpush.msra.mxu0 %v1088
        %1188 = vmatpush.msra.mxu0 %v1084
        %1189 = vmatpush.msra.mxu0 %v1080
        %1190 = vmatpush.msra.mxu0 %v1076
        %1191 = vmatmul.f32.gmra.mxu0 %v1101
        %v1192 = vpop.f32.mrf.mxu0
        %v1193 = vadd.f32 %v1098, %v1192
        %1194 = vdwg.mxu0
        %vm1195 = vcmp.gt.f32.partialorder %v1133, 0.0
        %vm1196 = vcmp.gt.f32.partialorder %v1153, 0.0
        %vm1197 = vcmp.gt.f32.partialorder %v1173, 0.0
        %vm1198 = vcmp.gt.f32.partialorder %v1193, 0.0
        %v1199 = vmin.f32 %v1133, 0.0
        %v1200 = vmin.f32 %v1153, 0.0
        %v1201 = vmin.f32 %v1173, 0.0
        %v1202 = vmin.f32 %v1193, 0.0
        %v1203 = vmul.f32 %v1199, 1.442695
        %v1204 = vpow.pop %v1203
        %v1205 = vmul.f32 %v1200, 1.442695
        %v1206 = vpow.pop %v1205
        %v1207 = vmul.f32 %v1201, 1.442695
        %v1208 = vpow.pop %v1207
        %v1209 = vmul.f32 %v1202, 1.442695
        %v1210 = vpow.pop %v1209
        %v1211 = vsub.f32 %v1204, 1.0
        %v1212 = vsub.f32 %v1206, 1.0
        %v1213 = vsub.f32 %v1208, 1.0
        %v1214 = vsub.f32 %v1210, 1.0
        %v1215 = vsel %vm1195, %v1133, %v1211
        %v1216 = vsel %vm1196, %v1153, %v1212
        %v1217 = vsel %vm1197, %v1173, %v1213
        %v1218 = vsel %vm1198, %v1193, %v1214
        %v1223 = vrot.slane %v1216, 4
        %v1224 = vrot.slane %v1218, 4
        %v1225 = vsel %vm629, %v1215, %v1223
        %v1226 = vsel %vm629, %v1217, %v1224
        %v1229 = vadd.f32 %v756, %v1225
        %v1230 = vadd.f32 %v757, %v1226
        %1231 = vst [vmem:[%s232] sm:$0xff] %v1229
        %1232 = vst [vmem:[%s232 + $0x8] sm:$0xff] %v1230
        %s1233 = sand.u32 %s119, 1
        %s1234 = scalar_lea.sflag [#allocation5], %s1233
        %s1235 = sand.u32 %s119, 1
        %s1236 = smul.addr %s1235, 16
        %s1237 = scalar_lea.vmem [#allocation8], %s1236
        // Predicated region
        $region45: #{tpu_custom_call.1} parent=35 // pred_check
          %p1238 = pneg %p129
        $region46: #{tpu_custom_call.1} parent=35 // pred_check_branch
          %1240 = sbr.rel (%p1238) target = $region48
        $region47: #{tpu_custom_call.1} parent=35 // pred_region
          %1242 = vsyncadd %s1234, 0
          %s1243 = smul.addr %s22, 4
          %s1244 = smul.addr %s1243, 4
          %s1245 = scalar_lea.hbm %s4, %s1244
          %s1247 = sshll.u32 %s1237, 4
          %s1248 = int_to_ptr.vmem [resolvable:$true] %s1247
          %s1249 = sshll.u32 %s1245, 4
          %s1250 = int_to_ptr.hbm [resolvable:$true] %s1249
          %1252 = dma.vmem_to_hbm [thread:$0]  %s1248, 256, %s1250, %s1234
        $region48: #{tpu_custom_call.1} parent=35 // pred_fallthru
          _
      $region36: #{tpu_custom_call.1} parent=5 // pred_fallthru
        _
      %p1253 = scmp.le.s32.totalorder 2, %s17
      // Predicated region
      $region49: #{tpu_custom_call.1} parent=5 // pred_check
        %p1254 = pneg %p1253
      $region50: #{tpu_custom_call.1} parent=5 // pred_check_branch
        %1256 = sbr.rel (%p1254) target = $region52
      $region51: #{tpu_custom_call.1} parent=5 // pred_region
        %s1257 = ssub.s32 %s17, 2
        // Predicated region
        $region53: #{tpu_custom_call.1} parent=51 // pred_check
          %p1258 = pneg %p135
        $region54: #{tpu_custom_call.1} parent=51 // pred_check_branch
          %1260 = sbr.rel (%p1258) target = $region56
        $region55: #{tpu_custom_call.1} parent=51 // pred_region
          %s1261 = sand.u32 %s120, 1
          %s1262 = scalar_lea.sflag [#allocation5], %s1261
          %s1263 = sand.u32 %s120, 1
          %s1264 = smul.addr %s1263, 16
          %s1265 = scalar_lea.vmem [#allocation8], %s1264
          %1267 = dma.done %s1262, 256
        $region56: #{tpu_custom_call.1} parent=51 // pred_fallthru
          _
      $region52: #{tpu_custom_call.1} parent=5 // pred_fallthru
        _
    $region6: #{tpu_custom_call.1} parent=1 // loop_footer
      %s21 = sadd.s32 1, %s17
    $region7: #{tpu_custom_call.1} parent=1 // loop_footer_branch
      %16 = sbr.rel target = $region3
    $region8: #{tpu_custom_call.1} parent=1 // loop_exit
      _
    %1268 = vsyncpa [#allocation4], 1
    %s1269 = scalar_lea.sflag [#allocation4], 1
    %1270 = vsyncpa %s1269, 1
    %1271 = vsyncpa [#allocation7], 1
    %1272 = vsyncpa [#allocation5], 1
    %s1273 = scalar_lea.sflag [#allocation5], 1
    %1274 = vsyncpa %s1273, 1

</llo_original>
